<compile_context>
chip_gen: v7x
topology: tpu7x:2x2x1
jax: 0.10.0
libtpu: 0.0.40
codegen_flags: <defaults>
</compile_context>

<pallas_src>
import functools

import jax
import jax.numpy as jnp
from jax import lax
from jax.experimental import pallas as pl
from jax.experimental.pallas import tpu as pltpu

FEATURE_DIM = 128


# ----------------------------------------------------------------------------
# Fused kernel: critic matmul -> L2 norm -> 6x batched cost blocks ->
# 6x batched Sinkhorn -> signed combination -> single SMEM scalar.
# ----------------------------------------------------------------------------
def _med_kernel(x0_ref, x1_ref, x2_ref, x3_ref, w_ref, o_ref,
                *, inv_eps, nb_iters, batch):
    """x*_ref: (batch, Din) f32 flattened images [x, x', y, y'].
       w_ref:  (Din, FEATURE_DIM) bf16 synthetic critic weight.
       o_ref:  (1, 1) f32 SMEM minibatch energy distance."""
    b = batch

    # ---- critic: one stacked linear projection (MXU) + L2 normalize --------
    # Concatenation is along the sublane axis only (whole-vreg blocks).  Cast
    # to bf16 for the MXU; accumulation and all post-matmul VPU/EUP math stay
    # f32 (v5e-safe).
    xcat = jnp.concatenate(
        [x0_ref[...], x1_ref[...], x2_ref[...], x3_ref[...]], axis=0)
    h = jnp.dot(xcat.astype(jnp.bfloat16), w_ref[...],
                preferred_element_type=jnp.float32)               # (4b, d) f32
    inv_norm = lax.rsqrt(jnp.sum(h * h, axis=-1, keepdims=True) + 1e-12)
    e = h * inv_norm                                              # unit rows

    # ---- six (b, b) cost blocks via ONE batched MXU matmul ------------------
    # Row blocks of e are sublane-aligned slices; pairs are stacked into
    # (6, b, d) left/right operands — no lane-offset slicing of a 4b x 4b Gram.
    # Pair order: (x,y), (x,y'), (x',y), (x',y'), (x,x'), (y,y').
    e0 = e[0 * b:1 * b]
    e1 = e[1 * b:2 * b]
    e2 = e[2 * b:3 * b]
    e3 = e[3 * b:4 * b]
    eL = jnp.stack([e0, e0, e1, e1, e0, e2], axis=0).astype(jnp.bfloat16)
    eR = jnp.stack([e2, e3, e2, e3, e1, e3], axis=0).astype(jnp.bfloat16)
    sim = jnp.einsum("bqd,bkd->bqk", eL, eR,
                     preferred_element_type=jnp.float32)          # (6, b, b)

    C = 1.0 - sim                                                 # cosine cost
    K = jnp.exp(-C * inv_eps)                                     # (6, b, b)

    # ---- batched Sinkhorn fixed point (uniform marginals 1/b) ---------------
    # Approx EUP reciprocals replace exact f32 divides on the serial critical
    # path; the 1e-30 floor guards against zero row/col sums from exp
    # underflow at small eps.  Sinkhorn is contractive, so the approx recip
    # error does not accumulate meaningfully.
    inv_b = 1.0 / b
    u0 = jnp.ones((6, b, 1), jnp.float32)
    v0 = jnp.ones((6, 1, b), jnp.float32)

    def body(_, uv):
        u, v = uv
        kv = jnp.sum(K * v, axis=2, keepdims=True) + 1e-30        # (6, b, 1)
        u = inv_b * pl.reciprocal(kv, approx=True)
        ktu = jnp.sum(K * u, axis=1, keepdims=True) + 1e-30       # (6, 1, b)
        v = inv_b * pl.reciprocal(ktu, approx=True)
        return (u, v)

    u, v = lax.fori_loop(0, nb_iters, body, (u0, v0), unroll=True)

    # ---- signed combination (+1,+1,+1,+1,-2,-2) and scalar output -----------
    cost = (u * K * v) * C                                        # (6, b, b)
    pos = cost[0] + cost[1] + cost[2] + cost[3]
    neg = cost[4] + cost[5]
    o_ref[0, 0] = jnp.sum(pos - 2.0 * neg)


# ----------------------------------------------------------------------------
# MinibatchEnergyDistance.forward (jitted wrapper around one pallas_call)
# ----------------------------------------------------------------------------
@functools.partial(
    jax.jit,
    static_argnames=("eps_regularization", "nb_sinkhorn_iterations"))
def minibatch_energy_distance(x, x_prime, y, y_prime, critic_w,
                              eps_regularization, nb_sinkhorn_iterations):
    b = x.shape[0]
    # Contiguous reshape only (free, no HBM copy); concat/casts live inside
    # the kernel so the per-call XLA graph is just the pallas_call.
    flat = lambda t: t.reshape(b, -1)

    out = pl.pallas_call(
        functools.partial(_med_kernel,
                          inv_eps=1.0 / float(eps_regularization),
                          nb_iters=int(nb_sinkhorn_iterations),
                          batch=b),
        out_shape=jax.ShapeDtypeStruct((1, 1), jnp.float32),
        in_specs=[
            pl.BlockSpec(memory_space=pltpu.MemorySpace.VMEM),  # x
            pl.BlockSpec(memory_space=pltpu.MemorySpace.VMEM),  # x'
            pl.BlockSpec(memory_space=pltpu.MemorySpace.VMEM),  # y
            pl.BlockSpec(memory_space=pltpu.MemorySpace.VMEM),  # y'
            pl.BlockSpec(memory_space=pltpu.MemorySpace.VMEM),  # critic weight
        ],
        out_specs=pl.BlockSpec(memory_space=pltpu.MemorySpace.SMEM),
    )(flat(x), flat(x_prime), flat(y), flat(y_prime), critic_w)
    return out[0, 0]


if __name__ == "__main__":
    key = jax.random.PRNGKey(0)
    kx, kxp, ky, kyp, kw = jax.random.split(key, 5)

    batch, channels, spatial = 8, 4, 16
    img_shape = (batch, channels, spatial, spatial)     # NCHW
    d_in = channels * spatial * spatial                 # 1024

    x = jax.random.normal(kx, img_shape, dtype=jnp.float32)
    x_prime = jax.random.normal(kxp, img_shape, dtype=jnp.float32)
    y = jax.random.normal(ky, img_shape, dtype=jnp.float32)
    y_prime = jax.random.normal(kyp, img_shape, dtype=jnp.float32)

    # Deterministic synthetic critic weight, stored persistently in bf16
    # (halves the weight DMA; MXU accumulates in f32 inside the kernel).
    critic_w = (jax.random.normal(kw, (d_in, FEATURE_DIM), dtype=jnp.float32)
                * 0.02).astype(jnp.bfloat16)

    eps_regularization = 0.1
    nb_sinkhorn_iterations = 10

    out = minibatch_energy_distance(x, x_prime, y, y_prime, critic_w,
                                    eps_regularization, nb_sinkhorn_iterations)
    out = jax.block_until_ready(out)
    assert out.shape == () and jnp.isfinite(out)
    print("KERNEL_OK")
</pallas_src>

<mosaic_0001>
module attributes {stable_mosaic.version = 11 : i64} {
  func.func @_med_kernel(%arg0: memref<8x1024xf32, #tpu.memory_space<vmem>>, %arg1: memref<8x1024xf32, #tpu.memory_space<vmem>>, %arg2: memref<8x1024xf32, #tpu.memory_space<vmem>>, %arg3: memref<8x1024xf32, #tpu.memory_space<vmem>>, %arg4: memref<1024x128xbf16, #tpu.memory_space<vmem>>, %arg5: memref<1x1xf32, #tpu.memory_space<smem>>) attributes {dimension_semantics = [], scalar_prefetch = 0 : i64, scratch_operands = 0 : i64, tpu.core_type = #tpu.core_type<tc>} {
    %c0 = arith.constant 0 : index
    %c0_0 = arith.constant 0 : index
    %0 = vector.load %arg0[%c0, %c0_0] : memref<8x1024xf32, #tpu.memory_space<vmem>>, vector<8x1024xf32>
    %c0_1 = arith.constant 0 : index
    %c0_2 = arith.constant 0 : index
    %1 = vector.load %arg1[%c0_1, %c0_2] : memref<8x1024xf32, #tpu.memory_space<vmem>>, vector<8x1024xf32>
    %c0_3 = arith.constant 0 : index
    %c0_4 = arith.constant 0 : index
    %2 = vector.load %arg2[%c0_3, %c0_4] : memref<8x1024xf32, #tpu.memory_space<vmem>>, vector<8x1024xf32>
    %c0_5 = arith.constant 0 : index
    %c0_6 = arith.constant 0 : index
    %3 = vector.load %arg3[%c0_5, %c0_6] : memref<8x1024xf32, #tpu.memory_space<vmem>>, vector<8x1024xf32>
    %4 = tpu.concatenate %0, %1, %2, %3 in 0 : vector<8x1024xf32>, vector<8x1024xf32>, vector<8x1024xf32>, vector<8x1024xf32> -> vector<32x1024xf32>
    %5 = arith.truncf %4 : vector<32x1024xf32> to vector<32x1024xbf16>
    %c0_7 = arith.constant 0 : index
    %c0_8 = arith.constant 0 : index
    %6 = vector.load %arg4[%c0_7, %c0_8] : memref<1024x128xbf16, #tpu.memory_space<vmem>>, vector<1024x128xbf16>
    %cst = arith.constant dense<0.000000e+00> : vector<32x128xf32>
    %7 = tpu.matmul %5, %6, %cst {dimension_numbers = #tpu.dot_dimension_numbers<[1], [0], [0], [1], [0, 0, 1, 1], [], []>} : vector<32x1024xbf16>, vector<1024x128xbf16>, vector<32x128xf32> -> vector<32x128xf32>
    %8 = arith.mulf %7, %7 : vector<32x128xf32>
    %cst_9 = arith.constant dense<0.000000e+00> : vector<32xf32>
    %9 = vector.multi_reduction <add>, %8, %cst_9 [1] : vector<32x128xf32> to vector<32xf32>
    %10 = vector.shape_cast %9 : vector<32xf32> to vector<32x1xf32>
    %cst_10 = arith.constant 9.99999996E-13 : f32
    %11 = vector.broadcast %cst_10 : f32 to vector<32x1xf32>
    %12 = arith.addf %10, %11 : vector<32x1xf32>
    %13 = math.rsqrt %12 : vector<32x1xf32>
    %14 = vector.broadcast %13 : vector<32x1xf32> to vector<32x128xf32>
    %15 = arith.mulf %7, %14 : vector<32x128xf32>
    %16 = vector.extract_strided_slice %15 {offsets = [0, 0], sizes = [8, 128], strides = [1, 1]} : vector<32x128xf32> to vector<8x128xf32>
    %17 = vector.extract_strided_slice %15 {offsets = [8, 0], sizes = [8, 128], strides = [1, 1]} : vector<32x128xf32> to vector<8x128xf32>
    %18 = vector.extract_strided_slice %15 {offsets = [16, 0], sizes = [8, 128], strides = [1, 1]} : vector<32x128xf32> to vector<8x128xf32>
    %19 = vector.extract_strided_slice %15 {offsets = [24, 0], sizes = [8, 128], strides = [1, 1]} : vector<32x128xf32> to vector<8x128xf32>
    %20 = vector.shape_cast %16 : vector<8x128xf32> to vector<1x8x128xf32>
    %21 = vector.shape_cast %16 : vector<8x128xf32> to vector<1x8x128xf32>
    %22 = vector.shape_cast %17 : vector<8x128xf32> to vector<1x8x128xf32>
    %23 = vector.shape_cast %17 : vector<8x128xf32> to vector<1x8x128xf32>
    %24 = vector.shape_cast %16 : vector<8x128xf32> to vector<1x8x128xf32>
    %25 = vector.shape_cast %18 : vector<8x128xf32> to vector<1x8x128xf32>
    %26 = tpu.concatenate %20, %21, %22, %23, %24, %25 in 0 : vector<1x8x128xf32>, vector<1x8x128xf32>, vector<1x8x128xf32>, vector<1x8x128xf32>, vector<1x8x128xf32>, vector<1x8x128xf32> -> vector<6x8x128xf32>
    %27 = arith.truncf %26 : vector<6x8x128xf32> to vector<6x8x128xbf16>
    %28 = vector.shape_cast %18 : vector<8x128xf32> to vector<1x8x128xf32>
    %29 = vector.shape_cast %19 : vector<8x128xf32> to vector<1x8x128xf32>
    %30 = vector.shape_cast %18 : vector<8x128xf32> to vector<1x8x128xf32>
    %31 = vector.shape_cast %19 : vector<8x128xf32> to vector<1x8x128xf32>
    %32 = vector.shape_cast %17 : vector<8x128xf32> to vector<1x8x128xf32>
    %33 = vector.shape_cast %19 : vector<8x128xf32> to vector<1x8x128xf32>
    %34 = tpu.concatenate %28, %29, %30, %31, %32, %33 in 0 : vector<1x8x128xf32>, vector<1x8x128xf32>, vector<1x8x128xf32>, vector<1x8x128xf32>, vector<1x8x128xf32>, vector<1x8x128xf32> -> vector<6x8x128xf32>
    %35 = arith.truncf %34 : vector<6x8x128xf32> to vector<6x8x128xbf16>
    "tpu.trace_start"() <{level = 10 : i32, message = "bqd,bkd->bqk"}> : () -> ()
    %cst_11 = arith.constant dense<0.000000e+00> : vector<6x8x8xf32>
    %36 = tpu.matmul %27, %35, %cst_11 {dimension_numbers = #tpu.dot_dimension_numbers<[2], [2], [1], [1], [0, 0, 0, 1, 1, 1], [0], [0]>} : vector<6x8x128xbf16>, vector<6x8x128xbf16>, vector<6x8x8xf32> -> vector<6x8x8xf32>
    "tpu.trace_stop"() : () -> ()
    %cst_12 = arith.constant 1.000000e+00 : f32
    %37 = vector.broadcast %cst_12 : f32 to vector<6x8x8xf32>
    %38 = arith.subf %37, %36 : vector<6x8x8xf32>
    %cst_13 = arith.constant 0.000000e+00 : f32
    %39 = vector.broadcast %cst_13 : f32 to vector<6x8x8xf32>
    %40 = arith.subf %39, %38 : vector<6x8x8xf32>
    %cst_14 = arith.constant 1.000000e+01 : f32
    %41 = vector.broadcast %cst_14 : f32 to vector<6x8x8xf32>
    %42 = arith.mulf %40, %41 : vector<6x8x8xf32>
    %43 = math.exp %42 : vector<6x8x8xf32>
    %cst_15 = arith.constant 1.000000e+00 : f32
    %44 = vector.broadcast %cst_15 : f32 to vector<6x8x1xf32>
    %cst_16 = arith.constant 1.000000e+00 : f32
    %45 = vector.broadcast %cst_16 : f32 to vector<6x1x8xf32>
    %c0_i32 = arith.constant 0 : i32
    %46 = vector.broadcast %45 : vector<6x1x8xf32> to vector<6x8x8xf32>
    %47 = arith.mulf %43, %46 : vector<6x8x8xf32>
    %cst_17 = arith.constant dense<0.000000e+00> : vector<6x8xf32>
    %48 = vector.multi_reduction <add>, %47, %cst_17 [2] : vector<6x8x8xf32> to vector<6x8xf32>
    %49 = vector.shape_cast %48 : vector<6x8xf32> to vector<6x8x1xf32>
    %cst_18 = arith.constant 1.000000e-30 : f32
    %50 = vector.broadcast %cst_18 : f32 to vector<6x8x1xf32>
    %51 = arith.addf %49, %50 : vector<6x8x1xf32>
    %52 = tpu.reciprocal %51 {approx = true} : vector<6x8x1xf32> -> vector<6x8x1xf32>
    %cst_19 = arith.constant 1.250000e-01 : f32
    %53 = vector.broadcast %cst_19 : f32 to vector<6x8x1xf32>
    %54 = arith.mulf %53, %52 : vector<6x8x1xf32>
    %55 = vector.broadcast %54 : vector<6x8x1xf32> to vector<6x8x8xf32>
    %56 = arith.mulf %43, %55 : vector<6x8x8xf32>
    %cst_20 = arith.constant dense<0.000000e+00> : vector<6x8xf32>
    %57 = vector.multi_reduction <add>, %56, %cst_20 [1] : vector<6x8x8xf32> to vector<6x8xf32>
    %58 = vector.shape_cast %57 : vector<6x8xf32> to vector<6x1x8xf32>
    %cst_21 = arith.constant 1.000000e-30 : f32
    %59 = vector.broadcast %cst_21 : f32 to vector<6x1x8xf32>
    %60 = arith.addf %58, %59 : vector<6x1x8xf32>
    %61 = tpu.reciprocal %60 {approx = true} : vector<6x1x8xf32> -> vector<6x1x8xf32>
    %cst_22 = arith.constant 1.250000e-01 : f32
    %62 = vector.broadcast %cst_22 : f32 to vector<6x1x8xf32>
    %63 = arith.mulf %62, %61 : vector<6x1x8xf32>
    %c1_i32 = arith.constant 1 : i32
    %64 = vector.broadcast %63 : vector<6x1x8xf32> to vector<6x8x8xf32>
    %65 = arith.mulf %43, %64 : vector<6x8x8xf32>
    %cst_23 = arith.constant dense<0.000000e+00> : vector<6x8xf32>
    %66 = vector.multi_reduction <add>, %65, %cst_23 [2] : vector<6x8x8xf32> to vector<6x8xf32>
    %67 = vector.shape_cast %66 : vector<6x8xf32> to vector<6x8x1xf32>
    %cst_24 = arith.constant 1.000000e-30 : f32
    %68 = vector.broadcast %cst_24 : f32 to vector<6x8x1xf32>
    %69 = arith.addf %67, %68 : vector<6x8x1xf32>
    %70 = tpu.reciprocal %69 {approx = true} : vector<6x8x1xf32> -> vector<6x8x1xf32>
    %cst_25 = arith.constant 1.250000e-01 : f32
    %71 = vector.broadcast %cst_25 : f32 to vector<6x8x1xf32>
    %72 = arith.mulf %71, %70 : vector<6x8x1xf32>
    %73 = vector.broadcast %72 : vector<6x8x1xf32> to vector<6x8x8xf32>
    %74 = arith.mulf %43, %73 : vector<6x8x8xf32>
    %cst_26 = arith.constant dense<0.000000e+00> : vector<6x8xf32>
    %75 = vector.multi_reduction <add>, %74, %cst_26 [1] : vector<6x8x8xf32> to vector<6x8xf32>
    %76 = vector.shape_cast %75 : vector<6x8xf32> to vector<6x1x8xf32>
    %cst_27 = arith.constant 1.000000e-30 : f32
    %77 = vector.broadcast %cst_27 : f32 to vector<6x1x8xf32>
    %78 = arith.addf %76, %77 : vector<6x1x8xf32>
    %79 = tpu.reciprocal %78 {approx = true} : vector<6x1x8xf32> -> vector<6x1x8xf32>
    %cst_28 = arith.constant 1.250000e-01 : f32
    %80 = vector.broadcast %cst_28 : f32 to vector<6x1x8xf32>
    %81 = arith.mulf %80, %79 : vector<6x1x8xf32>
    %c2_i32 = arith.constant 2 : i32
    %82 = vector.broadcast %81 : vector<6x1x8xf32> to vector<6x8x8xf32>
    %83 = arith.mulf %43, %82 : vector<6x8x8xf32>
    %cst_29 = arith.constant dense<0.000000e+00> : vector<6x8xf32>
    %84 = vector.multi_reduction <add>, %83, %cst_29 [2] : vector<6x8x8xf32> to vector<6x8xf32>
    %85 = vector.shape_cast %84 : vector<6x8xf32> to vector<6x8x1xf32>
    %cst_30 = arith.constant 1.000000e-30 : f32
    %86 = vector.broadcast %cst_30 : f32 to vector<6x8x1xf32>
    %87 = arith.addf %85, %86 : vector<6x8x1xf32>
    %88 = tpu.reciprocal %87 {approx = true} : vector<6x8x1xf32> -> vector<6x8x1xf32>
    %cst_31 = arith.constant 1.250000e-01 : f32
    %89 = vector.broadcast %cst_31 : f32 to vector<6x8x1xf32>
    %90 = arith.mulf %89, %88 : vector<6x8x1xf32>
    %91 = vector.broadcast %90 : vector<6x8x1xf32> to vector<6x8x8xf32>
    %92 = arith.mulf %43, %91 : vector<6x8x8xf32>
    %cst_32 = arith.constant dense<0.000000e+00> : vector<6x8xf32>
    %93 = vector.multi_reduction <add>, %92, %cst_32 [1] : vector<6x8x8xf32> to vector<6x8xf32>
    %94 = vector.shape_cast %93 : vector<6x8xf32> to vector<6x1x8xf32>
    %cst_33 = arith.constant 1.000000e-30 : f32
    %95 = vector.broadcast %cst_33 : f32 to vector<6x1x8xf32>
    %96 = arith.addf %94, %95 : vector<6x1x8xf32>
    %97 = tpu.reciprocal %96 {approx = true} : vector<6x1x8xf32> -> vector<6x1x8xf32>
    %cst_34 = arith.constant 1.250000e-01 : f32
    %98 = vector.broadcast %cst_34 : f32 to vector<6x1x8xf32>
    %99 = arith.mulf %98, %97 : vector<6x1x8xf32>
    %c3_i32 = arith.constant 3 : i32
    %100 = vector.broadcast %99 : vector<6x1x8xf32> to vector<6x8x8xf32>
    %101 = arith.mulf %43, %100 : vector<6x8x8xf32>
    %cst_35 = arith.constant dense<0.000000e+00> : vector<6x8xf32>
    %102 = vector.multi_reduction <add>, %101, %cst_35 [2] : vector<6x8x8xf32> to vector<6x8xf32>
    %103 = vector.shape_cast %102 : vector<6x8xf32> to vector<6x8x1xf32>
    %cst_36 = arith.constant 1.000000e-30 : f32
    %104 = vector.broadcast %cst_36 : f32 to vector<6x8x1xf32>
    %105 = arith.addf %103, %104 : vector<6x8x1xf32>
    %106 = tpu.reciprocal %105 {approx = true} : vector<6x8x1xf32> -> vector<6x8x1xf32>
    %cst_37 = arith.constant 1.250000e-01 : f32
    %107 = vector.broadcast %cst_37 : f32 to vector<6x8x1xf32>
    %108 = arith.mulf %107, %106 : vector<6x8x1xf32>
    %109 = vector.broadcast %108 : vector<6x8x1xf32> to vector<6x8x8xf32>
    %110 = arith.mulf %43, %109 : vector<6x8x8xf32>
    %cst_38 = arith.constant dense<0.000000e+00> : vector<6x8xf32>
    %111 = vector.multi_reduction <add>, %110, %cst_38 [1] : vector<6x8x8xf32> to vector<6x8xf32>
    %112 = vector.shape_cast %111 : vector<6x8xf32> to vector<6x1x8xf32>
    %cst_39 = arith.constant 1.000000e-30 : f32
    %113 = vector.broadcast %cst_39 : f32 to vector<6x1x8xf32>
    %114 = arith.addf %112, %113 : vector<6x1x8xf32>
    %115 = tpu.reciprocal %114 {approx = true} : vector<6x1x8xf32> -> vector<6x1x8xf32>
    %cst_40 = arith.constant 1.250000e-01 : f32
    %116 = vector.broadcast %cst_40 : f32 to vector<6x1x8xf32>
    %117 = arith.mulf %116, %115 : vector<6x1x8xf32>
    %c4_i32 = arith.constant 4 : i32
    %118 = vector.broadcast %117 : vector<6x1x8xf32> to vector<6x8x8xf32>
    %119 = arith.mulf %43, %118 : vector<6x8x8xf32>
    %cst_41 = arith.constant dense<0.000000e+00> : vector<6x8xf32>
    %120 = vector.multi_reduction <add>, %119, %cst_41 [2] : vector<6x8x8xf32> to vector<6x8xf32>
    %121 = vector.shape_cast %120 : vector<6x8xf32> to vector<6x8x1xf32>
    %cst_42 = arith.constant 1.000000e-30 : f32
    %122 = vector.broadcast %cst_42 : f32 to vector<6x8x1xf32>
    %123 = arith.addf %121, %122 : vector<6x8x1xf32>
    %124 = tpu.reciprocal %123 {approx = true} : vector<6x8x1xf32> -> vector<6x8x1xf32>
    %cst_43 = arith.constant 1.250000e-01 : f32
    %125 = vector.broadcast %cst_43 : f32 to vector<6x8x1xf32>
    %126 = arith.mulf %125, %124 : vector<6x8x1xf32>
    %127 = vector.broadcast %126 : vector<6x8x1xf32> to vector<6x8x8xf32>
    %128 = arith.mulf %43, %127 : vector<6x8x8xf32>
    %cst_44 = arith.constant dense<0.000000e+00> : vector<6x8xf32>
    %129 = vector.multi_reduction <add>, %128, %cst_44 [1] : vector<6x8x8xf32> to vector<6x8xf32>
    %130 = vector.shape_cast %129 : vector<6x8xf32> to vector<6x1x8xf32>
    %cst_45 = arith.constant 1.000000e-30 : f32
    %131 = vector.broadcast %cst_45 : f32 to vector<6x1x8xf32>
    %132 = arith.addf %130, %131 : vector<6x1x8xf32>
    %133 = tpu.reciprocal %132 {approx = true} : vector<6x1x8xf32> -> vector<6x1x8xf32>
    %cst_46 = arith.constant 1.250000e-01 : f32
    %134 = vector.broadcast %cst_46 : f32 to vector<6x1x8xf32>
    %135 = arith.mulf %134, %133 : vector<6x1x8xf32>
    %c5_i32 = arith.constant 5 : i32
    %136 = vector.broadcast %135 : vector<6x1x8xf32> to vector<6x8x8xf32>
    %137 = arith.mulf %43, %136 : vector<6x8x8xf32>
    %cst_47 = arith.constant dense<0.000000e+00> : vector<6x8xf32>
    %138 = vector.multi_reduction <add>, %137, %cst_47 [2] : vector<6x8x8xf32> to vector<6x8xf32>
    %139 = vector.shape_cast %138 : vector<6x8xf32> to vector<6x8x1xf32>
    %cst_48 = arith.constant 1.000000e-30 : f32
    %140 = vector.broadcast %cst_48 : f32 to vector<6x8x1xf32>
    %141 = arith.addf %139, %140 : vector<6x8x1xf32>
    %142 = tpu.reciprocal %141 {approx = true} : vector<6x8x1xf32> -> vector<6x8x1xf32>
    %cst_49 = arith.constant 1.250000e-01 : f32
    %143 = vector.broadcast %cst_49 : f32 to vector<6x8x1xf32>
    %144 = arith.mulf %143, %142 : vector<6x8x1xf32>
    %145 = vector.broadcast %144 : vector<6x8x1xf32> to vector<6x8x8xf32>
    %146 = arith.mulf %43, %145 : vector<6x8x8xf32>
    %cst_50 = arith.constant dense<0.000000e+00> : vector<6x8xf32>
    %147 = vector.multi_reduction <add>, %146, %cst_50 [1] : vector<6x8x8xf32> to vector<6x8xf32>
    %148 = vector.shape_cast %147 : vector<6x8xf32> to vector<6x1x8xf32>
    %cst_51 = arith.constant 1.000000e-30 : f32
    %149 = vector.broadcast %cst_51 : f32 to vector<6x1x8xf32>
    %150 = arith.addf %148, %149 : vector<6x1x8xf32>
    %151 = tpu.reciprocal %150 {approx = true} : vector<6x1x8xf32> -> vector<6x1x8xf32>
    %cst_52 = arith.constant 1.250000e-01 : f32
    %152 = vector.broadcast %cst_52 : f32 to vector<6x1x8xf32>
    %153 = arith.mulf %152, %151 : vector<6x1x8xf32>
    %c6_i32 = arith.constant 6 : i32
    %154 = vector.broadcast %153 : vector<6x1x8xf32> to vector<6x8x8xf32>
    %155 = arith.mulf %43, %154 : vector<6x8x8xf32>
    %cst_53 = arith.constant dense<0.000000e+00> : vector<6x8xf32>
    %156 = vector.multi_reduction <add>, %155, %cst_53 [2] : vector<6x8x8xf32> to vector<6x8xf32>
    %157 = vector.shape_cast %156 : vector<6x8xf32> to vector<6x8x1xf32>
    %cst_54 = arith.constant 1.000000e-30 : f32
    %158 = vector.broadcast %cst_54 : f32 to vector<6x8x1xf32>
    %159 = arith.addf %157, %158 : vector<6x8x1xf32>
    %160 = tpu.reciprocal %159 {approx = true} : vector<6x8x1xf32> -> vector<6x8x1xf32>
    %cst_55 = arith.constant 1.250000e-01 : f32
    %161 = vector.broadcast %cst_55 : f32 to vector<6x8x1xf32>
    %162 = arith.mulf %161, %160 : vector<6x8x1xf32>
    %163 = vector.broadcast %162 : vector<6x8x1xf32> to vector<6x8x8xf32>
    %164 = arith.mulf %43, %163 : vector<6x8x8xf32>
    %cst_56 = arith.constant dense<0.000000e+00> : vector<6x8xf32>
    %165 = vector.multi_reduction <add>, %164, %cst_56 [1] : vector<6x8x8xf32> to vector<6x8xf32>
    %166 = vector.shape_cast %165 : vector<6x8xf32> to vector<6x1x8xf32>
    %cst_57 = arith.constant 1.000000e-30 : f32
    %167 = vector.broadcast %cst_57 : f32 to vector<6x1x8xf32>
    %168 = arith.addf %166, %167 : vector<6x1x8xf32>
    %169 = tpu.reciprocal %168 {approx = true} : vector<6x1x8xf32> -> vector<6x1x8xf32>
    %cst_58 = arith.constant 1.250000e-01 : f32
    %170 = vector.broadcast %cst_58 : f32 to vector<6x1x8xf32>
    %171 = arith.mulf %170, %169 : vector<6x1x8xf32>
    %c7_i32 = arith.constant 7 : i32
    %172 = vector.broadcast %171 : vector<6x1x8xf32> to vector<6x8x8xf32>
    %173 = arith.mulf %43, %172 : vector<6x8x8xf32>
    %cst_59 = arith.constant dense<0.000000e+00> : vector<6x8xf32>
    %174 = vector.multi_reduction <add>, %173, %cst_59 [2] : vector<6x8x8xf32> to vector<6x8xf32>
    %175 = vector.shape_cast %174 : vector<6x8xf32> to vector<6x8x1xf32>
    %cst_60 = arith.constant 1.000000e-30 : f32
    %176 = vector.broadcast %cst_60 : f32 to vector<6x8x1xf32>
    %177 = arith.addf %175, %176 : vector<6x8x1xf32>
    %178 = tpu.reciprocal %177 {approx = true} : vector<6x8x1xf32> -> vector<6x8x1xf32>
    %cst_61 = arith.constant 1.250000e-01 : f32
    %179 = vector.broadcast %cst_61 : f32 to vector<6x8x1xf32>
    %180 = arith.mulf %179, %178 : vector<6x8x1xf32>
    %181 = vector.broadcast %180 : vector<6x8x1xf32> to vector<6x8x8xf32>
    %182 = arith.mulf %43, %181 : vector<6x8x8xf32>
    %cst_62 = arith.constant dense<0.000000e+00> : vector<6x8xf32>
    %183 = vector.multi_reduction <add>, %182, %cst_62 [1] : vector<6x8x8xf32> to vector<6x8xf32>
    %184 = vector.shape_cast %183 : vector<6x8xf32> to vector<6x1x8xf32>
    %cst_63 = arith.constant 1.000000e-30 : f32
    %185 = vector.broadcast %cst_63 : f32 to vector<6x1x8xf32>
    %186 = arith.addf %184, %185 : vector<6x1x8xf32>
    %187 = tpu.reciprocal %186 {approx = true} : vector<6x1x8xf32> -> vector<6x1x8xf32>
    %cst_64 = arith.constant 1.250000e-01 : f32
    %188 = vector.broadcast %cst_64 : f32 to vector<6x1x8xf32>
    %189 = arith.mulf %188, %187 : vector<6x1x8xf32>
    %c8_i32 = arith.constant 8 : i32
    %190 = vector.broadcast %189 : vector<6x1x8xf32> to vector<6x8x8xf32>
    %191 = arith.mulf %43, %190 : vector<6x8x8xf32>
    %cst_65 = arith.constant dense<0.000000e+00> : vector<6x8xf32>
    %192 = vector.multi_reduction <add>, %191, %cst_65 [2] : vector<6x8x8xf32> to vector<6x8xf32>
    %193 = vector.shape_cast %192 : vector<6x8xf32> to vector<6x8x1xf32>
    %cst_66 = arith.constant 1.000000e-30 : f32
    %194 = vector.broadcast %cst_66 : f32 to vector<6x8x1xf32>
    %195 = arith.addf %193, %194 : vector<6x8x1xf32>
    %196 = tpu.reciprocal %195 {approx = true} : vector<6x8x1xf32> -> vector<6x8x1xf32>
    %cst_67 = arith.constant 1.250000e-01 : f32
    %197 = vector.broadcast %cst_67 : f32 to vector<6x8x1xf32>
    %198 = arith.mulf %197, %196 : vector<6x8x1xf32>
    %199 = vector.broadcast %198 : vector<6x8x1xf32> to vector<6x8x8xf32>
    %200 = arith.mulf %43, %199 : vector<6x8x8xf32>
    %cst_68 = arith.constant dense<0.000000e+00> : vector<6x8xf32>
    %201 = vector.multi_reduction <add>, %200, %cst_68 [1] : vector<6x8x8xf32> to vector<6x8xf32>
    %202 = vector.shape_cast %201 : vector<6x8xf32> to vector<6x1x8xf32>
    %cst_69 = arith.constant 1.000000e-30 : f32
    %203 = vector.broadcast %cst_69 : f32 to vector<6x1x8xf32>
    %204 = arith.addf %202, %203 : vector<6x1x8xf32>
    %205 = tpu.reciprocal %204 {approx = true} : vector<6x1x8xf32> -> vector<6x1x8xf32>
    %cst_70 = arith.constant 1.250000e-01 : f32
    %206 = vector.broadcast %cst_70 : f32 to vector<6x1x8xf32>
    %207 = arith.mulf %206, %205 : vector<6x1x8xf32>
    %c9_i32 = arith.constant 9 : i32
    %208 = vector.broadcast %207 : vector<6x1x8xf32> to vector<6x8x8xf32>
    %209 = arith.mulf %43, %208 : vector<6x8x8xf32>
    %cst_71 = arith.constant dense<0.000000e+00> : vector<6x8xf32>
    %210 = vector.multi_reduction <add>, %209, %cst_71 [2] : vector<6x8x8xf32> to vector<6x8xf32>
    %211 = vector.shape_cast %210 : vector<6x8xf32> to vector<6x8x1xf32>
    %cst_72 = arith.constant 1.000000e-30 : f32
    %212 = vector.broadcast %cst_72 : f32 to vector<6x8x1xf32>
    %213 = arith.addf %211, %212 : vector<6x8x1xf32>
    %214 = tpu.reciprocal %213 {approx = true} : vector<6x8x1xf32> -> vector<6x8x1xf32>
    %cst_73 = arith.constant 1.250000e-01 : f32
    %215 = vector.broadcast %cst_73 : f32 to vector<6x8x1xf32>
    %216 = arith.mulf %215, %214 : vector<6x8x1xf32>
    %217 = vector.broadcast %216 : vector<6x8x1xf32> to vector<6x8x8xf32>
    %218 = arith.mulf %43, %217 : vector<6x8x8xf32>
    %cst_74 = arith.constant dense<0.000000e+00> : vector<6x8xf32>
    %219 = vector.multi_reduction <add>, %218, %cst_74 [1] : vector<6x8x8xf32> to vector<6x8xf32>
    %220 = vector.shape_cast %219 : vector<6x8xf32> to vector<6x1x8xf32>
    %cst_75 = arith.constant 1.000000e-30 : f32
    %221 = vector.broadcast %cst_75 : f32 to vector<6x1x8xf32>
    %222 = arith.addf %220, %221 : vector<6x1x8xf32>
    %223 = tpu.reciprocal %222 {approx = true} : vector<6x1x8xf32> -> vector<6x1x8xf32>
    %cst_76 = arith.constant 1.250000e-01 : f32
    %224 = vector.broadcast %cst_76 : f32 to vector<6x1x8xf32>
    %225 = arith.mulf %224, %223 : vector<6x1x8xf32>
    %226 = vector.broadcast %216 : vector<6x8x1xf32> to vector<6x8x8xf32>
    %227 = arith.mulf %226, %43 : vector<6x8x8xf32>
    %228 = vector.broadcast %225 : vector<6x1x8xf32> to vector<6x8x8xf32>
    %229 = arith.mulf %227, %228 : vector<6x8x8xf32>
    %230 = arith.mulf %229, %38 : vector<6x8x8xf32>
    %231 = vector.extract_strided_slice %230 {offsets = [0, 0, 0], sizes = [1, 8, 8], strides = [1, 1, 1]} : vector<6x8x8xf32> to vector<1x8x8xf32>
    %232 = vector.shape_cast %231 : vector<1x8x8xf32> to vector<8x8xf32>
    %233 = vector.extract_strided_slice %230 {offsets = [1, 0, 0], sizes = [1, 8, 8], strides = [1, 1, 1]} : vector<6x8x8xf32> to vector<1x8x8xf32>
    %234 = vector.shape_cast %233 : vector<1x8x8xf32> to vector<8x8xf32>
    %235 = arith.addf %232, %234 : vector<8x8xf32>
    %236 = vector.extract_strided_slice %230 {offsets = [2, 0, 0], sizes = [1, 8, 8], strides = [1, 1, 1]} : vector<6x8x8xf32> to vector<1x8x8xf32>
    %237 = vector.shape_cast %236 : vector<1x8x8xf32> to vector<8x8xf32>
    %238 = arith.addf %235, %237 : vector<8x8xf32>
    %239 = vector.extract_strided_slice %230 {offsets = [3, 0, 0], sizes = [1, 8, 8], strides = [1, 1, 1]} : vector<6x8x8xf32> to vector<1x8x8xf32>
    %240 = vector.shape_cast %239 : vector<1x8x8xf32> to vector<8x8xf32>
    %241 = arith.addf %238, %240 : vector<8x8xf32>
    %242 = vector.extract_strided_slice %230 {offsets = [4, 0, 0], sizes = [1, 8, 8], strides = [1, 1, 1]} : vector<6x8x8xf32> to vector<1x8x8xf32>
    %243 = vector.shape_cast %242 : vector<1x8x8xf32> to vector<8x8xf32>
    %244 = vector.extract_strided_slice %230 {offsets = [5, 0, 0], sizes = [1, 8, 8], strides = [1, 1, 1]} : vector<6x8x8xf32> to vector<1x8x8xf32>
    %245 = vector.shape_cast %244 : vector<1x8x8xf32> to vector<8x8xf32>
    %246 = arith.addf %243, %245 : vector<8x8xf32>
    %cst_77 = arith.constant 2.000000e+00 : f32
    %247 = vector.broadcast %cst_77 : f32 to vector<8x8xf32>
    %248 = arith.mulf %247, %246 : vector<8x8xf32>
    %249 = arith.subf %241, %248 : vector<8x8xf32>
    %250 = vector.shape_cast %249 : vector<8x8xf32> to vector<1x8x8xf32>
    %cst_78 = arith.constant dense<0.000000e+00> : vector<1xf32>
    %251 = vector.multi_reduction <add>, %250, %cst_78 [1, 2] : vector<1x8x8xf32> to vector<1xf32>
    %252 = vector.shape_cast %251 : vector<1xf32> to vector<1x1x1xf32>
    %253 = vector.extract %252[0, 0, 0] : f32 from vector<1x1x1xf32>
    %c0_79 = arith.constant 0 : index
    %c0_80 = arith.constant 0 : index
    %254 = memref.load %arg5[%c0_79, %c0_80] : memref<1x1xf32, #tpu.memory_space<smem>>
    memref.store %253, %arg5[%c0_79, %c0_80] : memref<1x1xf32, #tpu.memory_space<smem>>
    return
  }
}

</mosaic_0001>

<llo_original>
// kernel: minibatch_energy_distance.1
$region0: #{minibatch_energy_distance.1}
  #allocation0 [shape = 'u32[]', space=smem, size = 0x4, offset = 0x4, fixed_abs, tag = 'smem constant byte address 0x4 - core index']
  #allocation1 [shape = 'u32[144,128]{1,0:T(1,128)}', space=vmem, size = 0x12000, scoped, tag = 'internal scratch']
  %s0 = inlined_call_operand.vmem [shape: f32[8,1024], index: 0, kind: input, shape index: {}]
  %s1 = inlined_call_operand.vmem [shape: f32[8,1024], index: 1, kind: input, shape index: {}]
  %s2 = inlined_call_operand.vmem [shape: f32[8,1024], index: 2, kind: input, shape index: {}]
  %s3 = inlined_call_operand.vmem [shape: f32[8,1024], index: 3, kind: input, shape index: {}]
  %s4 = inlined_call_operand.vmem [shape: bf16[1024,128], index: 4, kind: input, shape index: {}]
  %s5 = inlined_call_operand.hbm [shape: f32[1,1], index: 5, kind: output, shape index: {}]
  %s6 = sld [smem:[#allocation0]]
  $region30: #{minibatch_energy_distance.1} parent=0
    _
  %s8 = ssub.s32 1, %s6
  %s9 = scalar_select 0, %s8, %s6
  $region1: #{minibatch_energy_distance.1} parent=0
    #allocation2 [shape = 'u8[512]{0}', space=smem, size = 0x200, scoped, tag = 'output window, operand 0, single buffered']
    #allocation3 [shape = 's32[1]{0}', space=sflag, size = 0x4, scoped, tag = 'scoped memory for minibatch_energy_distance.1']
    %10 = vsyncpa [#allocation3], 0
    // Predicated region
    $region2: #{minibatch_energy_distance.1} parent=1 // pred_check
      _
    $region3: #{minibatch_energy_distance.1} parent=1 // pred_check_branch
      %12 = sbr.rel (0) target = $region5
    $region4: #{minibatch_energy_distance.1} parent=1 // pred_region
      _
    $region5: #{minibatch_energy_distance.1} parent=1 // pred_fallthru
      _
    // Predicated region
    $region6: #{minibatch_energy_distance.1} parent=1 // pred_check
      _
    $region7: #{minibatch_energy_distance.1} parent=1 // pred_check_branch
      %14 = sbr.rel (0) target = $region9
    $region8: #{minibatch_energy_distance.1} parent=1 // pred_region
      _
    $region9: #{minibatch_energy_distance.1} parent=1 // pred_fallthru
      _
    // Predicated region
    $region10: #{minibatch_energy_distance.1} parent=1 // pred_check
      _
    $region11: #{minibatch_energy_distance.1} parent=1 // pred_check_branch
      %16 = sbr.rel (0) target = $region13
    $region12: #{minibatch_energy_distance.1} parent=1 // pred_region
      _
    $region13: #{minibatch_energy_distance.1} parent=1 // pred_fallthru
      _
    // Predicated region
    $region14: #{minibatch_energy_distance.1} parent=1 // pred_check
      _
    $region15: #{minibatch_energy_distance.1} parent=1 // pred_check_branch
      %18 = sbr.rel (0) target = $region17
    $region16: #{minibatch_energy_distance.1} parent=1 // pred_region
      _
    $region17: #{minibatch_energy_distance.1} parent=1 // pred_fallthru
      _
    // Predicated region
    $region18: #{minibatch_energy_distance.1} parent=1 // pred_check
      _
    $region19: #{minibatch_energy_distance.1} parent=1 // pred_check_branch
      %20 = sbr.rel (0) target = $region21
    $region20: #{minibatch_energy_distance.1} parent=1 // pred_region
      _
    $region21: #{minibatch_energy_distance.1} parent=1 // pred_fallthru
      _
    %v22 = vld [vmem:[%s0] sm:$0xff]
    %v23 = vld [vmem:[%s0 + $0x8] sm:$0xff]
    %v24 = vld [vmem:[%s0 + $0x10] sm:$0xff]
    %v25 = vld [vmem:[%s0 + $0x18] sm:$0xff]
    %v26 = vld [vmem:[%s0 + $0x20] sm:$0xff]
    %v27 = vld [vmem:[%s0 + $0x28] sm:$0xff]
    %v28 = vld [vmem:[%s0 + $0x30] sm:$0xff]
    %v29 = vld [vmem:[%s0 + $0x38] sm:$0xff]
    %v30 = vld [vmem:[%s1] sm:$0xff]
    %v31 = vld [vmem:[%s1 + $0x8] sm:$0xff]
    %v32 = vld [vmem:[%s1 + $0x10] sm:$0xff]
    %v33 = vld [vmem:[%s1 + $0x18] sm:$0xff]
    %v34 = vld [vmem:[%s1 + $0x20] sm:$0xff]
    %v35 = vld [vmem:[%s1 + $0x28] sm:$0xff]
    %v36 = vld [vmem:[%s1 + $0x30] sm:$0xff]
    %v37 = vld [vmem:[%s1 + $0x38] sm:$0xff]
    %v38 = vld [vmem:[%s2] sm:$0xff]
    %v39 = vld [vmem:[%s2 + $0x8] sm:$0xff]
    %v40 = vld [vmem:[%s2 + $0x10] sm:$0xff]
    %v41 = vld [vmem:[%s2 + $0x18] sm:$0xff]
    %v42 = vld [vmem:[%s2 + $0x20] sm:$0xff]
    %v43 = vld [vmem:[%s2 + $0x28] sm:$0xff]
    %v44 = vld [vmem:[%s2 + $0x30] sm:$0xff]
    %v45 = vld [vmem:[%s2 + $0x38] sm:$0xff]
    %v46 = vld [vmem:[%s3] sm:$0xff]
    %v47 = vld [vmem:[%s3 + $0x8] sm:$0xff]
    %v48 = vld [vmem:[%s3 + $0x10] sm:$0xff]
    %v49 = vld [vmem:[%s3 + $0x18] sm:$0xff]
    %v50 = vld [vmem:[%s3 + $0x20] sm:$0xff]
    %v51 = vld [vmem:[%s3 + $0x28] sm:$0xff]
    %v52 = vld [vmem:[%s3 + $0x30] sm:$0xff]
    %v53 = vld [vmem:[%s3 + $0x38] sm:$0xff]
    %v54 = vpack.c.bf16 %v30, %v22
    %v55 = vpack.c.bf16 %v31, %v23
    %v56 = vpack.c.bf16 %v32, %v24
    %v57 = vpack.c.bf16 %v33, %v25
    %v58 = vpack.c.bf16 %v34, %v26
    %v59 = vpack.c.bf16 %v35, %v27
    %v60 = vpack.c.bf16 %v36, %v28
    %v61 = vpack.c.bf16 %v37, %v29
    %v62 = vpack.c.bf16 %v46, %v38
    %v63 = vpack.c.bf16 %v47, %v39
    %v64 = vpack.c.bf16 %v48, %v40
    %v65 = vpack.c.bf16 %v49, %v41
    %v66 = vpack.c.bf16 %v50, %v42
    %v67 = vpack.c.bf16 %v51, %v43
    %v68 = vpack.c.bf16 %v52, %v44
    %v69 = vpack.c.bf16 %v53, %v45
    %v70 = vld [vmem:[%s4] sm:$0xf]
    %v71 = vld [vmem:[%s4 + $0x4] sm:$0xf]
    %v72 = vld [vmem:[%s4 + $0x8] sm:$0xf]
    %v73 = vld [vmem:[%s4 + $0xc] sm:$0xf]
    %v74 = vld [vmem:[%s4 + $0x10] sm:$0xf]
    %v75 = vld [vmem:[%s4 + $0x14] sm:$0xf]
    %v76 = vld [vmem:[%s4 + $0x18] sm:$0xf]
    %v77 = vld [vmem:[%s4 + $0x1c] sm:$0xf]
    %v78 = vld [vmem:[%s4 + $0x20] sm:$0xf]
    %v79 = vld [vmem:[%s4 + $0x24] sm:$0xf]
    %v80 = vld [vmem:[%s4 + $0x28] sm:$0xf]
    %v81 = vld [vmem:[%s4 + $0x2c] sm:$0xf]
    %v82 = vld [vmem:[%s4 + $0x30] sm:$0xf]
    %v83 = vld [vmem:[%s4 + $0x34] sm:$0xf]
    %v84 = vld [vmem:[%s4 + $0x38] sm:$0xf]
    %v85 = vld [vmem:[%s4 + $0x3c] sm:$0xf]
    %v86 = vld [vmem:[%s4 + $0x40] sm:$0xf]
    %v87 = vld [vmem:[%s4 + $0x44] sm:$0xf]
    %v88 = vld [vmem:[%s4 + $0x48] sm:$0xf]
    %v89 = vld [vmem:[%s4 + $0x4c] sm:$0xf]
    %v90 = vld [vmem:[%s4 + $0x50] sm:$0xf]
    %v91 = vld [vmem:[%s4 + $0x54] sm:$0xf]
    %v92 = vld [vmem:[%s4 + $0x58] sm:$0xf]
    %v93 = vld [vmem:[%s4 + $0x5c] sm:$0xf]
    %v94 = vld [vmem:[%s4 + $0x60] sm:$0xf]
    %v95 = vld [vmem:[%s4 + $0x64] sm:$0xf]
    %v96 = vld [vmem:[%s4 + $0x68] sm:$0xf]
    %v97 = vld [vmem:[%s4 + $0x6c] sm:$0xf]
    %v98 = vld [vmem:[%s4 + $0x70] sm:$0xf]
    %v99 = vld [vmem:[%s4 + $0x74] sm:$0xf]
    %v100 = vld [vmem:[%s4 + $0x78] sm:$0xf]
    %v101 = vld [vmem:[%s4 + $0x7c] sm:$0xf]
    %v102 = vld [vmem:[%s4 + $0x80] sm:$0xf]
    %v103 = vld [vmem:[%s4 + $0x84] sm:$0xf]
    %v104 = vld [vmem:[%s4 + $0x88] sm:$0xf]
    %v105 = vld [vmem:[%s4 + $0x8c] sm:$0xf]
    %v106 = vld [vmem:[%s4 + $0x90] sm:$0xf]
    %v107 = vld [vmem:[%s4 + $0x94] sm:$0xf]
    %v108 = vld [vmem:[%s4 + $0x98] sm:$0xf]
    %v109 = vld [vmem:[%s4 + $0x9c] sm:$0xf]
    %v110 = vld [vmem:[%s4 + $0xa0] sm:$0xf]
    %v111 = vld [vmem:[%s4 + $0xa4] sm:$0xf]
    %v112 = vld [vmem:[%s4 + $0xa8] sm:$0xf]
    %v113 = vld [vmem:[%s4 + $0xac] sm:$0xf]
    %v114 = vld [vmem:[%s4 + $0xb0] sm:$0xf]
    %v115 = vld [vmem:[%s4 + $0xb4] sm:$0xf]
    %v116 = vld [vmem:[%s4 + $0xb8] sm:$0xf]
    %v117 = vld [vmem:[%s4 + $0xbc] sm:$0xf]
    %v118 = vld [vmem:[%s4 + $0xc0] sm:$0xf]
    %v119 = vld [vmem:[%s4 + $0xc4] sm:$0xf]
    %v120 = vld [vmem:[%s4 + $0xc8] sm:$0xf]
    %v121 = vld [vmem:[%s4 + $0xcc] sm:$0xf]
    %v122 = vld [vmem:[%s4 + $0xd0] sm:$0xf]
    %v123 = vld [vmem:[%s4 + $0xd4] sm:$0xf]
    %v124 = vld [vmem:[%s4 + $0xd8] sm:$0xf]
    %v125 = vld [vmem:[%s4 + $0xdc] sm:$0xf]
    %v126 = vld [vmem:[%s4 + $0xe0] sm:$0xf]
    %v127 = vld [vmem:[%s4 + $0xe4] sm:$0xf]
    %v128 = vld [vmem:[%s4 + $0xe8] sm:$0xf]
    %v129 = vld [vmem:[%s4 + $0xec] sm:$0xf]
    %v130 = vld [vmem:[%s4 + $0xf0] sm:$0xf]
    %v131 = vld [vmem:[%s4 + $0xf4] sm:$0xf]
    %v132 = vld [vmem:[%s4 + $0xf8] sm:$0xf]
    %v133 = vld [vmem:[%s4 + $0xfc] sm:$0xf]
    %v134 = vld [vmem:[%s4 + $0x100] sm:$0xf]
    %v135 = vld [vmem:[%s4 + $0x104] sm:$0xf]
    %v136 = vld [vmem:[%s4 + $0x108] sm:$0xf]
    %v137 = vld [vmem:[%s4 + $0x10c] sm:$0xf]
    %v138 = vld [vmem:[%s4 + $0x110] sm:$0xf]
    %v139 = vld [vmem:[%s4 + $0x114] sm:$0xf]
    %v140 = vld [vmem:[%s4 + $0x118] sm:$0xf]
    %v141 = vld [vmem:[%s4 + $0x11c] sm:$0xf]
    %v142 = vld [vmem:[%s4 + $0x120] sm:$0xf]
    %v143 = vld [vmem:[%s4 + $0x124] sm:$0xf]
    %v144 = vld [vmem:[%s4 + $0x128] sm:$0xf]
    %v145 = vld [vmem:[%s4 + $0x12c] sm:$0xf]
    %v146 = vld [vmem:[%s4 + $0x130] sm:$0xf]
    %v147 = vld [vmem:[%s4 + $0x134] sm:$0xf]
    %v148 = vld [vmem:[%s4 + $0x138] sm:$0xf]
    %v149 = vld [vmem:[%s4 + $0x13c] sm:$0xf]
    %v150 = vld [vmem:[%s4 + $0x140] sm:$0xf]
    %v151 = vld [vmem:[%s4 + $0x144] sm:$0xf]
    %v152 = vld [vmem:[%s4 + $0x148] sm:$0xf]
    %v153 = vld [vmem:[%s4 + $0x14c] sm:$0xf]
    %v154 = vld [vmem:[%s4 + $0x150] sm:$0xf]
    %v155 = vld [vmem:[%s4 + $0x154] sm:$0xf]
    %v156 = vld [vmem:[%s4 + $0x158] sm:$0xf]
    %v157 = vld [vmem:[%s4 + $0x15c] sm:$0xf]
    %v158 = vld [vmem:[%s4 + $0x160] sm:$0xf]
    %v159 = vld [vmem:[%s4 + $0x164] sm:$0xf]
    %v160 = vld [vmem:[%s4 + $0x168] sm:$0xf]
    %v161 = vld [vmem:[%s4 + $0x16c] sm:$0xf]
    %v162 = vld [vmem:[%s4 + $0x170] sm:$0xf]
    %v163 = vld [vmem:[%s4 + $0x174] sm:$0xf]
    %v164 = vld [vmem:[%s4 + $0x178] sm:$0xf]
    %v165 = vld [vmem:[%s4 + $0x17c] sm:$0xf]
    %v166 = vld [vmem:[%s4 + $0x180] sm:$0xf]
    %v167 = vld [vmem:[%s4 + $0x184] sm:$0xf]
    %v168 = vld [vmem:[%s4 + $0x188] sm:$0xf]
    %v169 = vld [vmem:[%s4 + $0x18c] sm:$0xf]
    %v170 = vld [vmem:[%s4 + $0x190] sm:$0xf]
    %v171 = vld [vmem:[%s4 + $0x194] sm:$0xf]
    %v172 = vld [vmem:[%s4 + $0x198] sm:$0xf]
    %v173 = vld [vmem:[%s4 + $0x19c] sm:$0xf]
    %v174 = vld [vmem:[%s4 + $0x1a0] sm:$0xf]
    %v175 = vld [vmem:[%s4 + $0x1a4] sm:$0xf]
    %v176 = vld [vmem:[%s4 + $0x1a8] sm:$0xf]
    %v177 = vld [vmem:[%s4 + $0x1ac] sm:$0xf]
    %v178 = vld [vmem:[%s4 + $0x1b0] sm:$0xf]
    %v179 = vld [vmem:[%s4 + $0x1b4] sm:$0xf]
    %v180 = vld [vmem:[%s4 + $0x1b8] sm:$0xf]
    %v181 = vld [vmem:[%s4 + $0x1bc] sm:$0xf]
    %v182 = vld [vmem:[%s4 + $0x1c0] sm:$0xf]
    %v183 = vld [vmem:[%s4 + $0x1c4] sm:$0xf]
    %v184 = vld [vmem:[%s4 + $0x1c8] sm:$0xf]
    %v185 = vld [vmem:[%s4 + $0x1cc] sm:$0xf]
    %v186 = vld [vmem:[%s4 + $0x1d0] sm:$0xf]
    %v187 = vld [vmem:[%s4 + $0x1d4] sm:$0xf]
    %v188 = vld [vmem:[%s4 + $0x1d8] sm:$0xf]
    %v189 = vld [vmem:[%s4 + $0x1dc] sm:$0xf]
    %v190 = vld [vmem:[%s4 + $0x1e0] sm:$0xf]
    %v191 = vld [vmem:[%s4 + $0x1e4] sm:$0xf]
    %v192 = vld [vmem:[%s4 + $0x1e8] sm:$0xf]
    %v193 = vld [vmem:[%s4 + $0x1ec] sm:$0xf]
    %v194 = vld [vmem:[%s4 + $0x1f0] sm:$0xf]
    %v195 = vld [vmem:[%s4 + $0x1f4] sm:$0xf]
    %v196 = vld [vmem:[%s4 + $0x1f8] sm:$0xf]
    %v197 = vld [vmem:[%s4 + $0x1fc] sm:$0xf]
    %v326 = vunpack.c.l.b16 %v70
    %v327 = vunpack.c.l.b16 %v71
    %v328 = vunpack.c.l.b16 %v72
    %v329 = vunpack.c.l.b16 %v73
    %v330 = vunpack.c.l.b16 %v74
    %v331 = vunpack.c.l.b16 %v75
    %v332 = vunpack.c.l.b16 %v76
    %v333 = vunpack.c.l.b16 %v77
    %v334 = vunpack.c.l.b16 %v78
    %v335 = vunpack.c.l.b16 %v79
    %v336 = vunpack.c.l.b16 %v80
    %v337 = vunpack.c.l.b16 %v81
    %v338 = vunpack.c.l.b16 %v82
    %v339 = vunpack.c.l.b16 %v83
    %v340 = vunpack.c.l.b16 %v84
    %v341 = vunpack.c.l.b16 %v85
    %v342 = vunpack.c.l.b16 %v86
    %v343 = vunpack.c.l.b16 %v87
    %v344 = vunpack.c.l.b16 %v88
    %v345 = vunpack.c.l.b16 %v89
    %v346 = vunpack.c.l.b16 %v90
    %v347 = vunpack.c.l.b16 %v91
    %v348 = vunpack.c.l.b16 %v92
    %v349 = vunpack.c.l.b16 %v93
    %v350 = vunpack.c.l.b16 %v94
    %v351 = vunpack.c.l.b16 %v95
    %v352 = vunpack.c.l.b16 %v96
    %v353 = vunpack.c.l.b16 %v97
    %v354 = vunpack.c.l.b16 %v98
    %v355 = vunpack.c.l.b16 %v99
    %v356 = vunpack.c.l.b16 %v100
    %v357 = vunpack.c.l.b16 %v101
    %v358 = vunpack.c.l.b16 %v102
    %v359 = vunpack.c.l.b16 %v103
    %v360 = vunpack.c.l.b16 %v104
    %v361 = vunpack.c.l.b16 %v105
    %v362 = vunpack.c.l.b16 %v106
    %v363 = vunpack.c.l.b16 %v107
    %v364 = vunpack.c.l.b16 %v108
    %v365 = vunpack.c.l.b16 %v109
    %v366 = vunpack.c.l.b16 %v110
    %v367 = vunpack.c.l.b16 %v111
    %v368 = vunpack.c.l.b16 %v112
    %v369 = vunpack.c.l.b16 %v113
    %v370 = vunpack.c.l.b16 %v114
    %v371 = vunpack.c.l.b16 %v115
    %v372 = vunpack.c.l.b16 %v116
    %v373 = vunpack.c.l.b16 %v117
    %v374 = vunpack.c.l.b16 %v118
    %v375 = vunpack.c.l.b16 %v119
    %v376 = vunpack.c.l.b16 %v120
    %v377 = vunpack.c.l.b16 %v121
    %v378 = vunpack.c.l.b16 %v122
    %v379 = vunpack.c.l.b16 %v123
    %v380 = vunpack.c.l.b16 %v124
    %v381 = vunpack.c.l.b16 %v125
    %v382 = vunpack.c.l.b16 %v126
    %v383 = vunpack.c.l.b16 %v127
    %v384 = vunpack.c.l.b16 %v128
    %v385 = vunpack.c.l.b16 %v129
    %v386 = vunpack.c.l.b16 %v130
    %v387 = vunpack.c.l.b16 %v131
    %v388 = vunpack.c.l.b16 %v132
    %v389 = vunpack.c.l.b16 %v133
    %v390 = vunpack.c.l.b16 %v134
    %v391 = vunpack.c.l.b16 %v135
    %v392 = vunpack.c.l.b16 %v136
    %v393 = vunpack.c.l.b16 %v137
    %v394 = vunpack.c.l.b16 %v138
    %v395 = vunpack.c.l.b16 %v139
    %v396 = vunpack.c.l.b16 %v140
    %v397 = vunpack.c.l.b16 %v141
    %v398 = vunpack.c.l.b16 %v142
    %v399 = vunpack.c.l.b16 %v143
    %v400 = vunpack.c.l.b16 %v144
    %v401 = vunpack.c.l.b16 %v145
    %v402 = vunpack.c.l.b16 %v146
    %v403 = vunpack.c.l.b16 %v147
    %v404 = vunpack.c.l.b16 %v148
    %v405 = vunpack.c.l.b16 %v149
    %v406 = vunpack.c.l.b16 %v150
    %v407 = vunpack.c.l.b16 %v151
    %v408 = vunpack.c.l.b16 %v152
    %v409 = vunpack.c.l.b16 %v153
    %v410 = vunpack.c.l.b16 %v154
    %v411 = vunpack.c.l.b16 %v155
    %v412 = vunpack.c.l.b16 %v156
    %v413 = vunpack.c.l.b16 %v157
    %v414 = vunpack.c.l.b16 %v158
    %v415 = vunpack.c.l.b16 %v159
    %v416 = vunpack.c.l.b16 %v160
    %v417 = vunpack.c.l.b16 %v161
    %v418 = vunpack.c.l.b16 %v162
    %v419 = vunpack.c.l.b16 %v163
    %v420 = vunpack.c.l.b16 %v164
    %v421 = vunpack.c.l.b16 %v165
    %v422 = vunpack.c.l.b16 %v166
    %v423 = vunpack.c.l.b16 %v167
    %v424 = vunpack.c.l.b16 %v168
    %v425 = vunpack.c.l.b16 %v169
    %v426 = vunpack.c.l.b16 %v170
    %v427 = vunpack.c.l.b16 %v171
    %v428 = vunpack.c.l.b16 %v172
    %v429 = vunpack.c.l.b16 %v173
    %v430 = vunpack.c.l.b16 %v174
    %v431 = vunpack.c.l.b16 %v175
    %v432 = vunpack.c.l.b16 %v176
    %v433 = vunpack.c.l.b16 %v177
    %v434 = vunpack.c.l.b16 %v178
    %v435 = vunpack.c.l.b16 %v179
    %v436 = vunpack.c.l.b16 %v180
    %v437 = vunpack.c.l.b16 %v181
    %v438 = vunpack.c.l.b16 %v182
    %v439 = vunpack.c.l.b16 %v183
    %v440 = vunpack.c.l.b16 %v184
    %v441 = vunpack.c.l.b16 %v185
    %v442 = vunpack.c.l.b16 %v186
    %v443 = vunpack.c.l.b16 %v187
    %v444 = vunpack.c.l.b16 %v188
    %v445 = vunpack.c.l.b16 %v189
    %v446 = vunpack.c.l.b16 %v190
    %v447 = vunpack.c.l.b16 %v191
    %v448 = vunpack.c.l.b16 %v192
    %v449 = vunpack.c.l.b16 %v193
    %v450 = vunpack.c.l.b16 %v194
    %v451 = vunpack.c.l.b16 %v195
    %v452 = vunpack.c.l.b16 %v196
    %v453 = vunpack.c.l.b16 %v197
    %v454 = vpack.c.b16 %v327, %v326
    %v455 = vpack.c.b16 %v329, %v328
    %v456 = vpack.c.b16 %v331, %v330
    %v457 = vpack.c.b16 %v333, %v332
    %v458 = vpack.c.b16 %v335, %v334
    %v459 = vpack.c.b16 %v337, %v336
    %v460 = vpack.c.b16 %v339, %v338
    %v461 = vpack.c.b16 %v341, %v340
    %v462 = vpack.c.b16 %v343, %v342
    %v463 = vpack.c.b16 %v345, %v344
    %v464 = vpack.c.b16 %v347, %v346
    %v465 = vpack.c.b16 %v349, %v348
    %v466 = vpack.c.b16 %v351, %v350
    %v467 = vpack.c.b16 %v353, %v352
    %v468 = vpack.c.b16 %v355, %v354
    %v469 = vpack.c.b16 %v357, %v356
    %v470 = vpack.c.b16 %v359, %v358
    %v471 = vpack.c.b16 %v361, %v360
    %v472 = vpack.c.b16 %v363, %v362
    %v473 = vpack.c.b16 %v365, %v364
    %v474 = vpack.c.b16 %v367, %v366
    %v475 = vpack.c.b16 %v369, %v368
    %v476 = vpack.c.b16 %v371, %v370
    %v477 = vpack.c.b16 %v373, %v372
    %v478 = vpack.c.b16 %v375, %v374
    %v479 = vpack.c.b16 %v377, %v376
    %v480 = vpack.c.b16 %v379, %v378
    %v481 = vpack.c.b16 %v381, %v380
    %v482 = vpack.c.b16 %v383, %v382
    %v483 = vpack.c.b16 %v385, %v384
    %v484 = vpack.c.b16 %v387, %v386
    %v485 = vpack.c.b16 %v389, %v388
    %v486 = vpack.c.b16 %v391, %v390
    %v487 = vpack.c.b16 %v393, %v392
    %v488 = vpack.c.b16 %v395, %v394
    %v489 = vpack.c.b16 %v397, %v396
    %v490 = vpack.c.b16 %v399, %v398
    %v491 = vpack.c.b16 %v401, %v400
    %v492 = vpack.c.b16 %v403, %v402
    %v493 = vpack.c.b16 %v405, %v404
    %v494 = vpack.c.b16 %v407, %v406
    %v495 = vpack.c.b16 %v409, %v408
    %v496 = vpack.c.b16 %v411, %v410
    %v497 = vpack.c.b16 %v413, %v412
    %v498 = vpack.c.b16 %v415, %v414
    %v499 = vpack.c.b16 %v417, %v416
    %v500 = vpack.c.b16 %v419, %v418
    %v501 = vpack.c.b16 %v421, %v420
    %v502 = vpack.c.b16 %v423, %v422
    %v503 = vpack.c.b16 %v425, %v424
    %v504 = vpack.c.b16 %v427, %v426
    %v505 = vpack.c.b16 %v429, %v428
    %v506 = vpack.c.b16 %v431, %v430
    %v507 = vpack.c.b16 %v433, %v432
    %v508 = vpack.c.b16 %v435, %v434
    %v509 = vpack.c.b16 %v437, %v436
    %v510 = vpack.c.b16 %v439, %v438
    %v511 = vpack.c.b16 %v441, %v440
    %v512 = vpack.c.b16 %v443, %v442
    %v513 = vpack.c.b16 %v445, %v444
    %v514 = vpack.c.b16 %v447, %v446
    %v515 = vpack.c.b16 %v449, %v448
    %v516 = vpack.c.b16 %v451, %v450
    %v517 = vpack.c.b16 %v453, %v452
    %582 = vmatprep.subr.bf16.mxu0 0
    %583 = vmatpush1.bf16.msra.mxu0 %v454
    %584 = vmatprep.subr.bf16.mxu0 0
    %585 = vmatpush1.bf16.msra.mxu0 %v455
    %586 = vmatprep.subr.bf16.mxu0 0
    %587 = vmatpush1.bf16.msra.mxu0 %v456
    %588 = vmatprep.subr.bf16.mxu0 0
    %589 = vmatpush1.bf16.msra.mxu0 %v457
    %590 = vmatprep.subr.bf16.mxu0 0
    %591 = vmatpush1.bf16.msra.mxu0 %v458
    %592 = vmatprep.subr.bf16.mxu0 0
    %593 = vmatpush1.bf16.msra.mxu0 %v459
    %594 = vmatprep.subr.bf16.mxu0 0
    %595 = vmatpush1.bf16.msra.mxu0 %v460
    %596 = vmatprep.subr.bf16.mxu0 0
    %597 = vmatpush1.bf16.msra.mxu0 %v461
    %598 = vmatprep.subr.bf16.mxu0 0
    %599 = vmatpush1.bf16.msra.mxu0 %v462
    %600 = vmatprep.subr.bf16.mxu0 0
    %601 = vmatpush1.bf16.msra.mxu0 %v463
    %602 = vmatprep.subr.bf16.mxu0 0
    %603 = vmatpush1.bf16.msra.mxu0 %v464
    %604 = vmatprep.subr.bf16.mxu0 0
    %605 = vmatpush1.bf16.msra.mxu0 %v465
    %606 = vmatprep.subr.bf16.mxu0 0
    %607 = vmatpush1.bf16.msra.mxu0 %v466
    %608 = vmatprep.subr.bf16.mxu0 0
    %609 = vmatpush1.bf16.msra.mxu0 %v467
    %610 = vmatprep.subr.bf16.mxu0 0
    %611 = vmatpush1.bf16.msra.mxu0 %v468
    %612 = vmatprep.subr.bf16.mxu0 0
    %613 = vmatpush1.bf16.msra.mxu0 %v469
    %614 = vmatprep.mubr.bf16.mxu0 %v55
    %615 = vmatmul.mubr.bf16.gmra.mrb[0].mxu0 %v54
    %v616 = vpop.f32.mrb[0].mxu0
    %v617 = vadd.f32 0.0, %v616
    %v618 = vpop.f32.mrb[0].mxu0
    %v619 = vpop.f32.mrb[0].mxu0
    %v620 = vadd.f32 0.0, %v619
    %v621 = vpop.f32.mrb[0].mxu0
    %622 = vmatprep.mubr.bf16.mxu0 %v63
    %623 = vmatmul.mubr.bf16.gmra.mrb[0].mxu0 %v62
    %v624 = vpop.f32.mrb[0].mxu0
    %v625 = vadd.f32 0.0, %v624
    %v626 = vpop.f32.mrb[0].mxu0
    %v627 = vpop.f32.mrb[0].mxu0
    %v628 = vadd.f32 0.0, %v627
    %v629 = vpop.f32.mrb[0].mxu0
    %630 = vdwg.mxu0
    %631 = vmatprep.subr.bf16.mxu0 0
    %632 = vmatpush1.bf16.msra.mxu0 %v470
    %633 = vmatprep.subr.bf16.mxu0 0
    %634 = vmatpush1.bf16.msra.mxu0 %v471
    %635 = vmatprep.subr.bf16.mxu0 0
    %636 = vmatpush1.bf16.msra.mxu0 %v472
    %637 = vmatprep.subr.bf16.mxu0 0
    %638 = vmatpush1.bf16.msra.mxu0 %v473
    %639 = vmatprep.subr.bf16.mxu0 0
    %640 = vmatpush1.bf16.msra.mxu0 %v474
    %641 = vmatprep.subr.bf16.mxu0 0
    %642 = vmatpush1.bf16.msra.mxu0 %v475
    %643 = vmatprep.subr.bf16.mxu0 0
    %644 = vmatpush1.bf16.msra.mxu0 %v476
    %645 = vmatprep.subr.bf16.mxu0 0
    %646 = vmatpush1.bf16.msra.mxu0 %v477
    %647 = vmatprep.subr.bf16.mxu0 0
    %648 = vmatpush1.bf16.msra.mxu0 %v478
    %649 = vmatprep.subr.bf16.mxu0 0
    %650 = vmatpush1.bf16.msra.mxu0 %v479
    %651 = vmatprep.subr.bf16.mxu0 0
    %652 = vmatpush1.bf16.msra.mxu0 %v480
    %653 = vmatprep.subr.bf16.mxu0 0
    %654 = vmatpush1.bf16.msra.mxu0 %v481
    %655 = vmatprep.subr.bf16.mxu0 0
    %656 = vmatpush1.bf16.msra.mxu0 %v482
    %657 = vmatprep.subr.bf16.mxu0 0
    %658 = vmatpush1.bf16.msra.mxu0 %v483
    %659 = vmatprep.subr.bf16.mxu0 0
    %660 = vmatpush1.bf16.msra.mxu0 %v484
    %661 = vmatprep.subr.bf16.mxu0 0
    %662 = vmatpush1.bf16.msra.mxu0 %v485
    %663 = vmatprep.mubr.bf16.mxu0 %v57
    %664 = vmatmul.mubr.bf16.gmra.mrb[0].mxu0 %v56
    %v665 = vpop.f32.mrb[0].mxu0
    %v666 = vadd.f32 %v617, %v665
    %v667 = vpop.f32.mrb[0].mxu0
    %v668 = vpop.f32.mrb[0].mxu0
    %v669 = vadd.f32 %v620, %v668
    %v670 = vpop.f32.mrb[0].mxu0
    %671 = vmatprep.mubr.bf16.mxu0 %v65
    %672 = vmatmul.mubr.bf16.gmra.mrb[0].mxu0 %v64
    %v673 = vpop.f32.mrb[0].mxu0
    %v674 = vadd.f32 %v625, %v673
    %v675 = vpop.f32.mrb[0].mxu0
    %v676 = vpop.f32.mrb[0].mxu0
    %v677 = vadd.f32 %v628, %v676
    %v678 = vpop.f32.mrb[0].mxu0
    %679 = vdwg.mxu0
    %680 = vmatprep.subr.bf16.mxu0 0
    %681 = vmatpush1.bf16.msra.mxu0 %v486
    %682 = vmatprep.subr.bf16.mxu0 0
    %683 = vmatpush1.bf16.msra.mxu0 %v487
    %684 = vmatprep.subr.bf16.mxu0 0
    %685 = vmatpush1.bf16.msra.mxu0 %v488
    %686 = vmatprep.subr.bf16.mxu0 0
    %687 = vmatpush1.bf16.msra.mxu0 %v489
    %688 = vmatprep.subr.bf16.mxu0 0
    %689 = vmatpush1.bf16.msra.mxu0 %v490
    %690 = vmatprep.subr.bf16.mxu0 0
    %691 = vmatpush1.bf16.msra.mxu0 %v491
    %692 = vmatprep.subr.bf16.mxu0 0
    %693 = vmatpush1.bf16.msra.mxu0 %v492
    %694 = vmatprep.subr.bf16.mxu0 0
    %695 = vmatpush1.bf16.msra.mxu0 %v493
    %696 = vmatprep.subr.bf16.mxu0 0
    %697 = vmatpush1.bf16.msra.mxu0 %v494
    %698 = vmatprep.subr.bf16.mxu0 0
    %699 = vmatpush1.bf16.msra.mxu0 %v495
    %700 = vmatprep.subr.bf16.mxu0 0
    %701 = vmatpush1.bf16.msra.mxu0 %v496
    %702 = vmatprep.subr.bf16.mxu0 0
    %703 = vmatpush1.bf16.msra.mxu0 %v497
    %704 = vmatprep.subr.bf16.mxu0 0
    %705 = vmatpush1.bf16.msra.mxu0 %v498
    %706 = vmatprep.subr.bf16.mxu0 0
    %707 = vmatpush1.bf16.msra.mxu0 %v499
    %708 = vmatprep.subr.bf16.mxu0 0
    %709 = vmatpush1.bf16.msra.mxu0 %v500
    %710 = vmatprep.subr.bf16.mxu0 0
    %711 = vmatpush1.bf16.msra.mxu0 %v501
    %712 = vmatprep.mubr.bf16.mxu0 %v59
    %713 = vmatmul.mubr.bf16.gmra.mrb[0].mxu0 %v58
    %v714 = vpop.f32.mrb[0].mxu0
    %v715 = vadd.f32 %v666, %v714
    %v716 = vpop.f32.mrb[0].mxu0
    %v717 = vpop.f32.mrb[0].mxu0
    %v718 = vadd.f32 %v669, %v717
    %v719 = vpop.f32.mrb[0].mxu0
    %720 = vmatprep.mubr.bf16.mxu0 %v67
    %721 = vmatmul.mubr.bf16.gmra.mrb[0].mxu0 %v66
    %v722 = vpop.f32.mrb[0].mxu0
    %v723 = vadd.f32 %v674, %v722
    %v724 = vpop.f32.mrb[0].mxu0
    %v725 = vpop.f32.mrb[0].mxu0
    %v726 = vadd.f32 %v677, %v725
    %v727 = vpop.f32.mrb[0].mxu0
    %728 = vdwg.mxu0
    %729 = vmatprep.subr.bf16.mxu0 0
    %730 = vmatpush1.bf16.msra.mxu0 %v502
    %731 = vmatprep.subr.bf16.mxu0 0
    %732 = vmatpush1.bf16.msra.mxu0 %v503
    %733 = vmatprep.subr.bf16.mxu0 0
    %734 = vmatpush1.bf16.msra.mxu0 %v504
    %735 = vmatprep.subr.bf16.mxu0 0
    %736 = vmatpush1.bf16.msra.mxu0 %v505
    %737 = vmatprep.subr.bf16.mxu0 0
    %738 = vmatpush1.bf16.msra.mxu0 %v506
    %739 = vmatprep.subr.bf16.mxu0 0
    %740 = vmatpush1.bf16.msra.mxu0 %v507
    %741 = vmatprep.subr.bf16.mxu0 0
    %742 = vmatpush1.bf16.msra.mxu0 %v508
    %743 = vmatprep.subr.bf16.mxu0 0
    %744 = vmatpush1.bf16.msra.mxu0 %v509
    %745 = vmatprep.subr.bf16.mxu0 0
    %746 = vmatpush1.bf16.msra.mxu0 %v510
    %747 = vmatprep.subr.bf16.mxu0 0
    %748 = vmatpush1.bf16.msra.mxu0 %v511
    %749 = vmatprep.subr.bf16.mxu0 0
    %750 = vmatpush1.bf16.msra.mxu0 %v512
    %751 = vmatprep.subr.bf16.mxu0 0
    %752 = vmatpush1.bf16.msra.mxu0 %v513
    %753 = vmatprep.subr.bf16.mxu0 0
    %754 = vmatpush1.bf16.msra.mxu0 %v514
    %755 = vmatprep.subr.bf16.mxu0 0
    %756 = vmatpush1.bf16.msra.mxu0 %v515
    %757 = vmatprep.subr.bf16.mxu0 0
    %758 = vmatpush1.bf16.msra.mxu0 %v516
    %759 = vmatprep.subr.bf16.mxu0 0
    %760 = vmatpush1.bf16.msra.mxu0 %v517
    %761 = vmatprep.mubr.bf16.mxu0 %v61
    %762 = vmatmul.mubr.bf16.gmra.mrb[0].mxu0 %v60
    %v763 = vpop.f32.mrb[0].mxu0
    %v764 = vadd.f32 %v715, %v763
    %v765 = vpop.f32.mrb[0].mxu0
    %v766 = vpop.f32.mrb[0].mxu0
    %v767 = vadd.f32 %v718, %v766
    %v768 = vpop.f32.mrb[0].mxu0
    %769 = vmatprep.mubr.bf16.mxu0 %v69
    %770 = vmatmul.mubr.bf16.gmra.mrb[0].mxu0 %v68
    %v771 = vpop.f32.mrb[0].mxu0
    %v772 = vadd.f32 %v723, %v771
    %v773 = vpop.f32.mrb[0].mxu0
    %v774 = vpop.f32.mrb[0].mxu0
    %v775 = vadd.f32 %v726, %v774
    %v776 = vpop.f32.mrb[0].mxu0
    %777 = vdwg.mxu0
    %v778 = vmul.f32 %v764, %v764
    %v779 = vmul.f32 %v767, %v767
    %v780 = vmul.f32 %v772, %v772
    %v781 = vmul.f32 %v775, %v775
    %782 = vadd.xlane.f32.xlu0 %v778
    %v783 = vpop.xlane.xlu0 %782
    %784 = vadd.xlane.f32.xlu0 %v779
    %v785 = vpop.xlane.xlu0 %784
    %786 = vadd.xlane.f32.xlu0 %v780
    %v787 = vpop.xlane.xlu0 %786
    %788 = vadd.xlane.f32.xlu0 %v781
    %v789 = vpop.xlane.xlu0 %788
    %v790 = vadd.f32 %v783, 1e-12
    %v791 = vadd.f32 %v785, 1e-12
    %v792 = vadd.f32 %v787, 1e-12
    %v793 = vadd.f32 %v789, 1e-12
    %v794 = vrsqrt.pop %v790
    %v795 = vrsqrt.pop %v791
    %v796 = vrsqrt.pop %v792
    %v797 = vrsqrt.pop %v793
    %v798 = vmul.f32 %v764, %v794
    %v799 = vmul.f32 %v767, %v795
    %v800 = vmul.f32 %v772, %v796
    %v801 = vmul.f32 %v775, %v797
    %v802 = vpack.c.bf16 %v798, %v798
    %v803 = vpack.c.bf16 %v799, %v799
    %v804 = vpack.c.bf16 %v800, %v800
    %v805 = vpack.c.bf16 %v801, %v801
    %806 = vmatprep.subr.bf16.mxu0 0
    %807 = vmatpush1.bf16.xpose.msra.mxu0 %v804
    %808 = vmatprep.subr.bf16.mxu0 0
    %809 = vmatpush1.bf16.xpose.msra.mxu0 0
    %810 = vmatprep.subr.bf16.mxu0 0
    %811 = vmatpush1.bf16.xpose.msra.mxu0 0
    %812 = vmatprep.subr.bf16.mxu0 0
    %813 = vmatpush1.bf16.xpose.msra.mxu0 0
    %814 = vmatprep.subr.bf16.mxu0 0
    %815 = vmatpush1.bf16.xpose.msra.mxu0 0
    %816 = vmatprep.subr.bf16.mxu0 0
    %817 = vmatpush1.bf16.xpose.msra.mxu0 0
    %818 = vmatprep.subr.bf16.mxu0 0
    %819 = vmatpush1.bf16.xpose.msra.mxu0 0
    %820 = vmatprep.subr.bf16.mxu0 0
    %821 = vmatpush1.bf16.xpose.msra.mxu0 0
    %822 = vmatprep.subr.bf16.mxu0 0
    %823 = vmatpush1.bf16.xpose.msra.mxu0 0
    %824 = vmatprep.subr.bf16.mxu0 0
    %825 = vmatpush1.bf16.xpose.msra.mxu0 0
    %826 = vmatprep.subr.bf16.mxu0 0
    %827 = vmatpush1.bf16.xpose.msra.mxu0 0
    %828 = vmatprep.subr.bf16.mxu0 0
    %829 = vmatpush1.bf16.xpose.msra.mxu0 0
    %830 = vmatprep.subr.bf16.mxu0 0
    %831 = vmatpush1.bf16.xpose.msra.mxu0 0
    %832 = vmatprep.subr.bf16.mxu0 0
    %833 = vmatpush1.bf16.xpose.msra.mxu0 0
    %834 = vmatprep.subr.bf16.mxu0 0
    %835 = vmatpush1.bf16.xpose.msra.mxu0 0
    %836 = vmatprep.subr.bf16.mxu0 0
    %837 = vmatpush1.bf16.xpose.msra.mxu0 0
    %838 = vmatprep.mubr.bf16.mxu0 0
    %839 = vmatmul.mubr.bf16.gmra.mrb[0].mxu0 %v802
    %v840 = vpop.f32.mrb[0].mxu0
    %v841 = vadd.f32 0.0, %v840
    %v842 = vpop.f32.mrb[0].mxu0
    %v843 = vpop.f32.mrb[0].mxu0
    %v844 = vpop.f32.mrb[0].mxu0
    %845 = vdwg.mxu0
    %846 = vmatprep.subr.bf16.mxu0 0
    %847 = vmatpush1.bf16.xpose.msra.mxu0 %v805
    %848 = vmatprep.subr.bf16.mxu0 0
    %849 = vmatpush1.bf16.xpose.msra.mxu0 0
    %850 = vmatprep.subr.bf16.mxu0 0
    %851 = vmatpush1.bf16.xpose.msra.mxu0 0
    %852 = vmatprep.subr.bf16.mxu0 0
    %853 = vmatpush1.bf16.xpose.msra.mxu0 0
    %854 = vmatprep.subr.bf16.mxu0 0
    %855 = vmatpush1.bf16.xpose.msra.mxu0 0
    %856 = vmatprep.subr.bf16.mxu0 0
    %857 = vmatpush1.bf16.xpose.msra.mxu0 0
    %858 = vmatprep.subr.bf16.mxu0 0
    %859 = vmatpush1.bf16.xpose.msra.mxu0 0
    %860 = vmatprep.subr.bf16.mxu0 0
    %861 = vmatpush1.bf16.xpose.msra.mxu0 0
    %862 = vmatprep.subr.bf16.mxu0 0
    %863 = vmatpush1.bf16.xpose.msra.mxu0 0
    %864 = vmatprep.subr.bf16.mxu0 0
    %865 = vmatpush1.bf16.xpose.msra.mxu0 0
    %866 = vmatprep.subr.bf16.mxu0 0
    %867 = vmatpush1.bf16.xpose.msra.mxu0 0
    %868 = vmatprep.subr.bf16.mxu0 0
    %869 = vmatpush1.bf16.xpose.msra.mxu0 0
    %870 = vmatprep.subr.bf16.mxu0 0
    %871 = vmatpush1.bf16.xpose.msra.mxu0 0
    %872 = vmatprep.subr.bf16.mxu0 0
    %873 = vmatpush1.bf16.xpose.msra.mxu0 0
    %874 = vmatprep.subr.bf16.mxu0 0
    %875 = vmatpush1.bf16.xpose.msra.mxu0 0
    %876 = vmatprep.subr.bf16.mxu0 0
    %877 = vmatpush1.bf16.xpose.msra.mxu0 0
    %878 = vmatprep.mubr.bf16.mxu0 0
    %879 = vmatmul.mubr.bf16.gmra.mrb[0].mxu0 %v802
    %v880 = vpop.f32.mrb[0].mxu0
    %v881 = vadd.f32 0.0, %v880
    %v882 = vpop.f32.mrb[0].mxu0
    %v883 = vpop.f32.mrb[0].mxu0
    %v884 = vpop.f32.mrb[0].mxu0
    %885 = vdwg.mxu0
    %886 = vmatprep.subr.bf16.mxu0 0
    %887 = vmatpush1.bf16.xpose.msra.mxu0 %v804
    %888 = vmatprep.subr.bf16.mxu0 0
    %889 = vmatpush1.bf16.xpose.msra.mxu0 0
    %890 = vmatprep.subr.bf16.mxu0 0
    %891 = vmatpush1.bf16.xpose.msra.mxu0 0
    %892 = vmatprep.subr.bf16.mxu0 0
    %893 = vmatpush1.bf16.xpose.msra.mxu0 0
    %894 = vmatprep.subr.bf16.mxu0 0
    %895 = vmatpush1.bf16.xpose.msra.mxu0 0
    %896 = vmatprep.subr.bf16.mxu0 0
    %897 = vmatpush1.bf16.xpose.msra.mxu0 0
    %898 = vmatprep.subr.bf16.mxu0 0
    %899 = vmatpush1.bf16.xpose.msra.mxu0 0
    %900 = vmatprep.subr.bf16.mxu0 0
    %901 = vmatpush1.bf16.xpose.msra.mxu0 0
    %902 = vmatprep.subr.bf16.mxu0 0
    %903 = vmatpush1.bf16.xpose.msra.mxu0 0
    %904 = vmatprep.subr.bf16.mxu0 0
    %905 = vmatpush1.bf16.xpose.msra.mxu0 0
    %906 = vmatprep.subr.bf16.mxu0 0
    %907 = vmatpush1.bf16.xpose.msra.mxu0 0
    %908 = vmatprep.subr.bf16.mxu0 0
    %909 = vmatpush1.bf16.xpose.msra.mxu0 0
    %910 = vmatprep.subr.bf16.mxu0 0
    %911 = vmatpush1.bf16.xpose.msra.mxu0 0
    %912 = vmatprep.subr.bf16.mxu0 0
    %913 = vmatpush1.bf16.xpose.msra.mxu0 0
    %914 = vmatprep.subr.bf16.mxu0 0
    %915 = vmatpush1.bf16.xpose.msra.mxu0 0
    %916 = vmatprep.subr.bf16.mxu0 0
    %917 = vmatpush1.bf16.xpose.msra.mxu0 0
    %918 = vmatprep.mubr.bf16.mxu0 0
    %919 = vmatmul.mubr.bf16.gmra.mrb[0].mxu0 %v803
    %v920 = vpop.f32.mrb[0].mxu0
    %v921 = vadd.f32 0.0, %v920
    %v922 = vpop.f32.mrb[0].mxu0
    %v923 = vpop.f32.mrb[0].mxu0
    %v924 = vpop.f32.mrb[0].mxu0
    %925 = vdwg.mxu0
    %926 = vmatprep.subr.bf16.mxu0 0
    %927 = vmatpush1.bf16.xpose.msra.mxu0 %v805
    %928 = vmatprep.subr.bf16.mxu0 0
    %929 = vmatpush1.bf16.xpose.msra.mxu0 0
    %930 = vmatprep.subr.bf16.mxu0 0
    %931 = vmatpush1.bf16.xpose.msra.mxu0 0
    %932 = vmatprep.subr.bf16.mxu0 0
    %933 = vmatpush1.bf16.xpose.msra.mxu0 0
    %934 = vmatprep.subr.bf16.mxu0 0
    %935 = vmatpush1.bf16.xpose.msra.mxu0 0
    %936 = vmatprep.subr.bf16.mxu0 0
    %937 = vmatpush1.bf16.xpose.msra.mxu0 0
    %938 = vmatprep.subr.bf16.mxu0 0
    %939 = vmatpush1.bf16.xpose.msra.mxu0 0
    %940 = vmatprep.subr.bf16.mxu0 0
    %941 = vmatpush1.bf16.xpose.msra.mxu0 0
    %942 = vmatprep.subr.bf16.mxu0 0
    %943 = vmatpush1.bf16.xpose.msra.mxu0 0
    %944 = vmatprep.subr.bf16.mxu0 0
    %945 = vmatpush1.bf16.xpose.msra.mxu0 0
    %946 = vmatprep.subr.bf16.mxu0 0
    %947 = vmatpush1.bf16.xpose.msra.mxu0 0
    %948 = vmatprep.subr.bf16.mxu0 0
    %949 = vmatpush1.bf16.xpose.msra.mxu0 0
    %950 = vmatprep.subr.bf16.mxu0 0
    %951 = vmatpush1.bf16.xpose.msra.mxu0 0
    %952 = vmatprep.subr.bf16.mxu0 0
    %953 = vmatpush1.bf16.xpose.msra.mxu0 0
    %954 = vmatprep.subr.bf16.mxu0 0
    %955 = vmatpush1.bf16.xpose.msra.mxu0 0
    %956 = vmatprep.subr.bf16.mxu0 0
    %957 = vmatpush1.bf16.xpose.msra.mxu0 0
    %958 = vmatprep.mubr.bf16.mxu0 0
    %959 = vmatmul.mubr.bf16.gmra.mrb[0].mxu0 %v803
    %v960 = vpop.f32.mrb[0].mxu0
    %v961 = vadd.f32 0.0, %v960
    %v962 = vpop.f32.mrb[0].mxu0
    %v963 = vpop.f32.mrb[0].mxu0
    %v964 = vpop.f32.mrb[0].mxu0
    %965 = vdwg.mxu0
    %966 = vmatprep.subr.bf16.mxu0 0
    %967 = vmatpush1.bf16.xpose.msra.mxu0 %v803
    %968 = vmatprep.subr.bf16.mxu0 0
    %969 = vmatpush1.bf16.xpose.msra.mxu0 0
    %970 = vmatprep.subr.bf16.mxu0 0
    %971 = vmatpush1.bf16.xpose.msra.mxu0 0
    %972 = vmatprep.subr.bf16.mxu0 0
    %973 = vmatpush1.bf16.xpose.msra.mxu0 0
    %974 = vmatprep.subr.bf16.mxu0 0
    %975 = vmatpush1.bf16.xpose.msra.mxu0 0
    %976 = vmatprep.subr.bf16.mxu0 0
    %977 = vmatpush1.bf16.xpose.msra.mxu0 0
    %978 = vmatprep.subr.bf16.mxu0 0
    %979 = vmatpush1.bf16.xpose.msra.mxu0 0
    %980 = vmatprep.subr.bf16.mxu0 0
    %981 = vmatpush1.bf16.xpose.msra.mxu0 0
    %982 = vmatprep.subr.bf16.mxu0 0
    %983 = vmatpush1.bf16.xpose.msra.mxu0 0
    %984 = vmatprep.subr.bf16.mxu0 0
    %985 = vmatpush1.bf16.xpose.msra.mxu0 0
    %986 = vmatprep.subr.bf16.mxu0 0
    %987 = vmatpush1.bf16.xpose.msra.mxu0 0
    %988 = vmatprep.subr.bf16.mxu0 0
    %989 = vmatpush1.bf16.xpose.msra.mxu0 0
    %990 = vmatprep.subr.bf16.mxu0 0
    %991 = vmatpush1.bf16.xpose.msra.mxu0 0
    %992 = vmatprep.subr.bf16.mxu0 0
    %993 = vmatpush1.bf16.xpose.msra.mxu0 0
    %994 = vmatprep.subr.bf16.mxu0 0
    %995 = vmatpush1.bf16.xpose.msra.mxu0 0
    %996 = vmatprep.subr.bf16.mxu0 0
    %997 = vmatpush1.bf16.xpose.msra.mxu0 0
    %998 = vmatprep.mubr.bf16.mxu0 0
    %999 = vmatmul.mubr.bf16.gmra.mrb[0].mxu0 %v802
    %v1000 = vpop.f32.mrb[0].mxu0
    %v1001 = vadd.f32 0.0, %v1000
    %v1002 = vpop.f32.mrb[0].mxu0
    %v1003 = vpop.f32.mrb[0].mxu0
    %v1004 = vpop.f32.mrb[0].mxu0
    %1005 = vdwg.mxu0
    %1006 = vmatprep.subr.bf16.mxu0 0
    %1007 = vmatpush1.bf16.xpose.msra.mxu0 %v805
    %1008 = vmatprep.subr.bf16.mxu0 0
    %1009 = vmatpush1.bf16.xpose.msra.mxu0 0
    %1010 = vmatprep.subr.bf16.mxu0 0
    %1011 = vmatpush1.bf16.xpose.msra.mxu0 0
    %1012 = vmatprep.subr.bf16.mxu0 0
    %1013 = vmatpush1.bf16.xpose.msra.mxu0 0
    %1014 = vmatprep.subr.bf16.mxu0 0
    %1015 = vmatpush1.bf16.xpose.msra.mxu0 0
    %1016 = vmatprep.subr.bf16.mxu0 0
    %1017 = vmatpush1.bf16.xpose.msra.mxu0 0
    %1018 = vmatprep.subr.bf16.mxu0 0
    %1019 = vmatpush1.bf16.xpose.msra.mxu0 0
    %1020 = vmatprep.subr.bf16.mxu0 0
    %1021 = vmatpush1.bf16.xpose.msra.mxu0 0
    %1022 = vmatprep.subr.bf16.mxu0 0
    %1023 = vmatpush1.bf16.xpose.msra.mxu0 0
    %1024 = vmatprep.subr.bf16.mxu0 0
    %1025 = vmatpush1.bf16.xpose.msra.mxu0 0
    %1026 = vmatprep.subr.bf16.mxu0 0
    %1027 = vmatpush1.bf16.xpose.msra.mxu0 0
    %1028 = vmatprep.subr.bf16.mxu0 0
    %1029 = vmatpush1.bf16.xpose.msra.mxu0 0
    %1030 = vmatprep.subr.bf16.mxu0 0
    %1031 = vmatpush1.bf16.xpose.msra.mxu0 0
    %1032 = vmatprep.subr.bf16.mxu0 0
    %1033 = vmatpush1.bf16.xpose.msra.mxu0 0
    %1034 = vmatprep.subr.bf16.mxu0 0
    %1035 = vmatpush1.bf16.xpose.msra.mxu0 0
    %1036 = vmatprep.subr.bf16.mxu0 0
    %1037 = vmatpush1.bf16.xpose.msra.mxu0 0
    %1038 = vmatprep.mubr.bf16.mxu0 0
    %1039 = vmatmul.mubr.bf16.gmra.mrb[0].mxu0 %v804
    %v1040 = vpop.f32.mrb[0].mxu0
    %v1041 = vadd.f32 0.0, %v1040
    %v1042 = vpop.f32.mrb[0].mxu0
    %v1043 = vpop.f32.mrb[0].mxu0
    %v1044 = vpop.f32.mrb[0].mxu0
    %1045 = vdwg.mxu0
    %v1046 = vsub.f32 1.0, %v841
    %v1047 = vsub.f32 1.0, %v881
    %v1048 = vsub.f32 1.0, %v921
    %v1049 = vsub.f32 1.0, %v961
    %v1050 = vsub.f32 1.0, %v1001
    %v1051 = vsub.f32 1.0, %v1041
    %v1052 = vsub.f32 0.0, %v1046
    %v1053 = vsub.f32 0.0, %v1047
    %v1054 = vsub.f32 0.0, %v1048
    %v1055 = vsub.f32 0.0, %v1049
    %v1056 = vsub.f32 0.0, %v1050
    %v1057 = vsub.f32 0.0, %v1051
    %v1058 = vmul.f32 %v1052, 10.0
    %v1059 = vmul.f32 %v1053, 10.0
    %v1060 = vmul.f32 %v1054, 10.0
    %v1061 = vmul.f32 %v1055, 10.0
    %v1062 = vmul.f32 %v1056, 10.0
    %v1063 = vmul.f32 %v1057, 10.0
    %v1064 = vmul.f32 %v1058, 1.442695
    %v1065 = vpow.pop %v1064
    %v1066 = vmul.f32 %v1059, 1.442695
    %v1067 = vpow.pop %v1066
    %v1068 = vmul.f32 %v1060, 1.442695
    %v1069 = vpow.pop %v1068
    %v1070 = vmul.f32 %v1061, 1.442695
    %v1071 = vpow.pop %v1070
    %v1072 = vmul.f32 %v1062, 1.442695
    %v1073 = vpow.pop %v1072
    %v1074 = vmul.f32 %v1063, 1.442695
    %v1075 = vpow.pop %v1074
    %vm1076 = vcmask 64512
    %v1077 = vsel %vm1076, %v1065, 0.0
    %1078 = vadd.xlane.f32.xlu0 %v1077
    %v1079 = vpop.xlane.xlu0 %1078
    %v1080 = vsel %vm1076, %v1067, 0.0
    %1081 = vadd.xlane.f32.xlu0 %v1080
    %v1082 = vpop.xlane.xlu0 %1081
    %v1083 = vsel %vm1076, %v1069, 0.0
    %1084 = vadd.xlane.f32.xlu0 %v1083
    %v1085 = vpop.xlane.xlu0 %1084
    %v1086 = vsel %vm1076, %v1071, 0.0
    %1087 = vadd.xlane.f32.xlu0 %v1086
    %v1088 = vpop.xlane.xlu0 %1087
    %v1089 = vsel %vm1076, %v1073, 0.0
    %1090 = vadd.xlane.f32.xlu0 %v1089
    %v1091 = vpop.xlane.xlu0 %1090
    %v1092 = vsel %vm1076, %v1075, 0.0
    %1093 = vadd.xlane.f32.xlu0 %v1092
    %v1094 = vpop.xlane.xlu0 %1093
    %v1095 = vadd.f32 %v1079, 1e-30
    %v1096 = vadd.f32 %v1082, 1e-30
    %v1097 = vadd.f32 %v1085, 1e-30
    %v1098 = vadd.f32 %v1088, 1e-30
    %v1099 = vadd.f32 %v1091, 1e-30
    %v1100 = vadd.f32 %v1094, 1e-30
    %v1101 = vrcp.pop %v1095
    %v1102 = vrcp.pop %v1096
    %v1103 = vrcp.pop %v1097
    %v1104 = vrcp.pop %v1098
    %v1105 = vrcp.pop %v1099
    %v1106 = vrcp.pop %v1100
    %v1107 = vmul.f32 %v1101, 0.125
    %v1108 = vmul.f32 %v1102, 0.125
    %v1109 = vmul.f32 %v1103, 0.125
    %v1110 = vmul.f32 %v1104, 0.125
    %v1111 = vmul.f32 %v1105, 0.125
    %v1112 = vmul.f32 %v1106, 0.125
    %v1113 = vmul.f32 %v1065, %v1107
    %v1114 = vmul.f32 %v1067, %v1108
    %v1115 = vmul.f32 %v1069, %v1109
    %v1116 = vmul.f32 %v1071, %v1110
    %v1117 = vmul.f32 %v1073, %v1111
    %v1118 = vmul.f32 %v1075, %v1112
    %v1119 = vsel %vm1076, %v1113, 0.0
    %v1120 = vrot.slane %v1119, 4
    %v1121 = vadd.f32 %v1119, %v1120
    %v1122 = vrot.slane %v1121, 2
    %v1123 = vadd.f32 %v1121, %v1122
    %v1124 = vrot.slane %v1123, 1
    %v1125 = vadd.f32 %v1123, %v1124
    %v1126 = vsel %vm1076, %v1114, 0.0
    %v1127 = vrot.slane %v1126, 4
    %v1128 = vadd.f32 %v1126, %v1127
    %v1129 = vrot.slane %v1128, 2
    %v1130 = vadd.f32 %v1128, %v1129
    %v1131 = vrot.slane %v1130, 1
    %v1132 = vadd.f32 %v1130, %v1131
    %v1133 = vsel %vm1076, %v1115, 0.0
    %v1134 = vrot.slane %v1133, 4
    %v1135 = vadd.f32 %v1133, %v1134
    %v1136 = vrot.slane %v1135, 2
    %v1137 = vadd.f32 %v1135, %v1136
    %v1138 = vrot.slane %v1137, 1
    %v1139 = vadd.f32 %v1137, %v1138
    %v1140 = vsel %vm1076, %v1116, 0.0
    %v1141 = vrot.slane %v1140, 4
    %v1142 = vadd.f32 %v1140, %v1141
    %v1143 = vrot.slane %v1142, 2
    %v1144 = vadd.f32 %v1142, %v1143
    %v1145 = vrot.slane %v1144, 1
    %v1146 = vadd.f32 %v1144, %v1145
    %v1147 = vsel %vm1076, %v1117, 0.0
    %v1148 = vrot.slane %v1147, 4
    %v1149 = vadd.f32 %v1147, %v1148
    %v1150 = vrot.slane %v1149, 2
    %v1151 = vadd.f32 %v1149, %v1150
    %v1152 = vrot.slane %v1151, 1
    %v1153 = vadd.f32 %v1151, %v1152
    %v1154 = vsel %vm1076, %v1118, 0.0
    %v1155 = vrot.slane %v1154, 4
    %v1156 = vadd.f32 %v1154, %v1155
    %v1157 = vrot.slane %v1156, 2
    %v1158 = vadd.f32 %v1156, %v1157
    %v1159 = vrot.slane %v1158, 1
    %v1160 = vadd.f32 %v1158, %v1159
    %v1161 = vadd.f32 %v1125, 1e-30
    %v1162 = vadd.f32 %v1132, 1e-30
    %v1163 = vadd.f32 %v1139, 1e-30
    %v1164 = vadd.f32 %v1146, 1e-30
    %v1165 = vadd.f32 %v1153, 1e-30
    %v1166 = vadd.f32 %v1160, 1e-30
    %v1167 = vrcp.pop %v1161
    %v1168 = vrcp.pop %v1162
    %v1169 = vrcp.pop %v1163
    %v1170 = vrcp.pop %v1164
    %v1171 = vrcp.pop %v1165
    %v1172 = vrcp.pop %v1166
    %v1173 = vmul.f32 %v1167, 0.125
    %v1174 = vmul.f32 %v1168, 0.125
    %v1175 = vmul.f32 %v1169, 0.125
    %v1176 = vmul.f32 %v1170, 0.125
    %v1177 = vmul.f32 %v1171, 0.125
    %v1178 = vmul.f32 %v1172, 0.125
    %v1179 = vmul.f32 %v1065, %v1173
    %v1180 = vmul.f32 %v1067, %v1174
    %v1181 = vmul.f32 %v1069, %v1175
    %v1182 = vmul.f32 %v1071, %v1176
    %v1183 = vmul.f32 %v1073, %v1177
    %v1184 = vmul.f32 %v1075, %v1178
    %v1185 = vsel %vm1076, %v1179, 0.0
    %1186 = vadd.xlane.f32.xlu0 %v1185
    %v1187 = vpop.xlane.xlu0 %1186
    %v1188 = vsel %vm1076, %v1180, 0.0
    %1189 = vadd.xlane.f32.xlu0 %v1188
    %v1190 = vpop.xlane.xlu0 %1189
    %v1191 = vsel %vm1076, %v1181, 0.0
    %1192 = vadd.xlane.f32.xlu0 %v1191
    %v1193 = vpop.xlane.xlu0 %1192
    %v1194 = vsel %vm1076, %v1182, 0.0
    %1195 = vadd.xlane.f32.xlu0 %v1194
    %v1196 = vpop.xlane.xlu0 %1195
    %v1197 = vsel %vm1076, %v1183, 0.0
    %1198 = vadd.xlane.f32.xlu0 %v1197
    %v1199 = vpop.xlane.xlu0 %1198
    %v1200 = vsel %vm1076, %v1184, 0.0
    %1201 = vadd.xlane.f32.xlu0 %v1200
    %v1202 = vpop.xlane.xlu0 %1201
    %v1203 = vadd.f32 %v1187, 1e-30
    %v1204 = vadd.f32 %v1190, 1e-30
    %v1205 = vadd.f32 %v1193, 1e-30
    %v1206 = vadd.f32 %v1196, 1e-30
    %v1207 = vadd.f32 %v1199, 1e-30
    %v1208 = vadd.f32 %v1202, 1e-30
    %v1209 = vrcp.pop %v1203
    %v1210 = vrcp.pop %v1204
    %v1211 = vrcp.pop %v1205
    %v1212 = vrcp.pop %v1206
    %v1213 = vrcp.pop %v1207
    %v1214 = vrcp.pop %v1208
    %v1215 = vmul.f32 %v1209, 0.125
    %v1216 = vmul.f32 %v1210, 0.125
    %v1217 = vmul.f32 %v1211, 0.125
    %v1218 = vmul.f32 %v1212, 0.125
    %v1219 = vmul.f32 %v1213, 0.125
    %v1220 = vmul.f32 %v1214, 0.125
    %v1221 = vmul.f32 %v1065, %v1215
    %v1222 = vmul.f32 %v1067, %v1216
    %v1223 = vmul.f32 %v1069, %v1217
    %v1224 = vmul.f32 %v1071, %v1218
    %v1225 = vmul.f32 %v1073, %v1219
    %v1226 = vmul.f32 %v1075, %v1220
    %v1227 = vsel %vm1076, %v1221, 0.0
    %v1228 = vrot.slane %v1227, 4
    %v1229 = vadd.f32 %v1227, %v1228
    %v1230 = vrot.slane %v1229, 2
    %v1231 = vadd.f32 %v1229, %v1230
    %v1232 = vrot.slane %v1231, 1
    %v1233 = vadd.f32 %v1231, %v1232
    %v1234 = vsel %vm1076, %v1222, 0.0
    %v1235 = vrot.slane %v1234, 4
    %v1236 = vadd.f32 %v1234, %v1235
    %v1237 = vrot.slane %v1236, 2
    %v1238 = vadd.f32 %v1236, %v1237
    %v1239 = vrot.slane %v1238, 1
    %v1240 = vadd.f32 %v1238, %v1239
    %v1241 = vsel %vm1076, %v1223, 0.0
    %v1242 = vrot.slane %v1241, 4
    %v1243 = vadd.f32 %v1241, %v1242
    %v1244 = vrot.slane %v1243, 2
    %v1245 = vadd.f32 %v1243, %v1244
    %v1246 = vrot.slane %v1245, 1
    %v1247 = vadd.f32 %v1245, %v1246
    %v1248 = vsel %vm1076, %v1224, 0.0
    %v1249 = vrot.slane %v1248, 4
    %v1250 = vadd.f32 %v1248, %v1249
    %v1251 = vrot.slane %v1250, 2
    %v1252 = vadd.f32 %v1250, %v1251
    %v1253 = vrot.slane %v1252, 1
    %v1254 = vadd.f32 %v1252, %v1253
    %v1255 = vsel %vm1076, %v1225, 0.0
    %v1256 = vrot.slane %v1255, 4
    %v1257 = vadd.f32 %v1255, %v1256
    %v1258 = vrot.slane %v1257, 2
    %v1259 = vadd.f32 %v1257, %v1258
    %v1260 = vrot.slane %v1259, 1
    %v1261 = vadd.f32 %v1259, %v1260
    %v1262 = vsel %vm1076, %v1226, 0.0
    %v1263 = vrot.slane %v1262, 4
    %v1264 = vadd.f32 %v1262, %v1263
    %v1265 = vrot.slane %v1264, 2
    %v1266 = vadd.f32 %v1264, %v1265
    %v1267 = vrot.slane %v1266, 1
    %v1268 = vadd.f32 %v1266, %v1267
    %v1269 = vadd.f32 %v1233, 1e-30
    %v1270 = vadd.f32 %v1240, 1e-30
    %v1271 = vadd.f32 %v1247, 1e-30
    %v1272 = vadd.f32 %v1254, 1e-30
    %v1273 = vadd.f32 %v1261, 1e-30
    %v1274 = vadd.f32 %v1268, 1e-30
    %v1275 = vrcp.pop %v1269
    %v1276 = vrcp.pop %v1270
    %v1277 = vrcp.pop %v1271
    %v1278 = vrcp.pop %v1272
    %v1279 = vrcp.pop %v1273
    %v1280 = vrcp.pop %v1274
    %v1281 = vmul.f32 %v1275, 0.125
    %v1282 = vmul.f32 %v1276, 0.125
    %v1283 = vmul.f32 %v1277, 0.125
    %v1284 = vmul.f32 %v1278, 0.125
    %v1285 = vmul.f32 %v1279, 0.125
    %v1286 = vmul.f32 %v1280, 0.125
    %v1287 = vmul.f32 %v1065, %v1281
    %v1288 = vmul.f32 %v1067, %v1282
    %v1289 = vmul.f32 %v1069, %v1283
    %v1290 = vmul.f32 %v1071, %v1284
    %v1291 = vmul.f32 %v1073, %v1285
    %v1292 = vmul.f32 %v1075, %v1286
    %v1293 = vsel %vm1076, %v1287, 0.0
    %1294 = vadd.xlane.f32.xlu0 %v1293
    %v1295 = vpop.xlane.xlu0 %1294
    %v1296 = vsel %vm1076, %v1288, 0.0
    %1297 = vadd.xlane.f32.xlu0 %v1296
    %v1298 = vpop.xlane.xlu0 %1297
    %v1299 = vsel %vm1076, %v1289, 0.0
    %1300 = vadd.xlane.f32.xlu0 %v1299
    %v1301 = vpop.xlane.xlu0 %1300
    %v1302 = vsel %vm1076, %v1290, 0.0
    %1303 = vadd.xlane.f32.xlu0 %v1302
    %v1304 = vpop.xlane.xlu0 %1303
    %v1305 = vsel %vm1076, %v1291, 0.0
    %1306 = vadd.xlane.f32.xlu0 %v1305
    %v1307 = vpop.xlane.xlu0 %1306
    %v1308 = vsel %vm1076, %v1292, 0.0
    %1309 = vadd.xlane.f32.xlu0 %v1308
    %v1310 = vpop.xlane.xlu0 %1309
    %v1311 = vadd.f32 %v1295, 1e-30
    %v1312 = vadd.f32 %v1298, 1e-30
    %v1313 = vadd.f32 %v1301, 1e-30
    %v1314 = vadd.f32 %v1304, 1e-30
    %v1315 = vadd.f32 %v1307, 1e-30
    %v1316 = vadd.f32 %v1310, 1e-30
    %v1317 = vrcp.pop %v1311
    %v1318 = vrcp.pop %v1312
    %v1319 = vrcp.pop %v1313
    %v1320 = vrcp.pop %v1314
    %v1321 = vrcp.pop %v1315
    %v1322 = vrcp.pop %v1316
    %v1323 = vmul.f32 %v1317, 0.125
    %v1324 = vmul.f32 %v1318, 0.125
    %v1325 = vmul.f32 %v1319, 0.125
    %v1326 = vmul.f32 %v1320, 0.125
    %v1327 = vmul.f32 %v1321, 0.125
    %v1328 = vmul.f32 %v1322, 0.125
    %v1329 = vmul.f32 %v1065, %v1323
    %v1330 = vmul.f32 %v1067, %v1324
    %v1331 = vmul.f32 %v1069, %v1325
    %v1332 = vmul.f32 %v1071, %v1326
    %v1333 = vmul.f32 %v1073, %v1327
    %v1334 = vmul.f32 %v1075, %v1328
    %v1335 = vsel %vm1076, %v1329, 0.0
    %v1336 = vrot.slane %v1335, 4
    %v1337 = vadd.f32 %v1335, %v1336
    %v1338 = vrot.slane %v1337, 2
    %v1339 = vadd.f32 %v1337, %v1338
    %v1340 = vrot.slane %v1339, 1
    %v1341 = vadd.f32 %v1339, %v1340
    %v1342 = vsel %vm1076, %v1330, 0.0
    %v1343 = vrot.slane %v1342, 4
    %v1344 = vadd.f32 %v1342, %v1343
    %v1345 = vrot.slane %v1344, 2
    %v1346 = vadd.f32 %v1344, %v1345
    %v1347 = vrot.slane %v1346, 1
    %v1348 = vadd.f32 %v1346, %v1347
    %v1349 = vsel %vm1076, %v1331, 0.0
    %v1350 = vrot.slane %v1349, 4
    %v1351 = vadd.f32 %v1349, %v1350
    %v1352 = vrot.slane %v1351, 2
    %v1353 = vadd.f32 %v1351, %v1352
    %v1354 = vrot.slane %v1353, 1
    %v1355 = vadd.f32 %v1353, %v1354
    %v1356 = vsel %vm1076, %v1332, 0.0
    %v1357 = vrot.slane %v1356, 4
    %v1358 = vadd.f32 %v1356, %v1357
    %v1359 = vrot.slane %v1358, 2
    %v1360 = vadd.f32 %v1358, %v1359
    %v1361 = vrot.slane %v1360, 1
    %v1362 = vadd.f32 %v1360, %v1361
    %v1363 = vsel %vm1076, %v1333, 0.0
    %v1364 = vrot.slane %v1363, 4
    %v1365 = vadd.f32 %v1363, %v1364
    %v1366 = vrot.slane %v1365, 2
    %v1367 = vadd.f32 %v1365, %v1366
    %v1368 = vrot.slane %v1367, 1
    %v1369 = vadd.f32 %v1367, %v1368
    %v1370 = vsel %vm1076, %v1334, 0.0
    %v1371 = vrot.slane %v1370, 4
    %v1372 = vadd.f32 %v1370, %v1371
    %v1373 = vrot.slane %v1372, 2
    %v1374 = vadd.f32 %v1372, %v1373
    %v1375 = vrot.slane %v1374, 1
    %v1376 = vadd.f32 %v1374, %v1375
    %v1377 = vadd.f32 %v1341, 1e-30
    %v1378 = vadd.f32 %v1348, 1e-30
    %v1379 = vadd.f32 %v1355, 1e-30
    %v1380 = vadd.f32 %v1362, 1e-30
    %v1381 = vadd.f32 %v1369, 1e-30
    %v1382 = vadd.f32 %v1376, 1e-30
    %v1383 = vrcp.pop %v1377
    %v1384 = vrcp.pop %v1378
    %v1385 = vrcp.pop %v1379
    %v1386 = vrcp.pop %v1380
    %v1387 = vrcp.pop %v1381
    %v1388 = vrcp.pop %v1382
    %v1389 = vmul.f32 %v1383, 0.125
    %v1390 = vmul.f32 %v1384, 0.125
    %v1391 = vmul.f32 %v1385, 0.125
    %v1392 = vmul.f32 %v1386, 0.125
    %v1393 = vmul.f32 %v1387, 0.125
    %v1394 = vmul.f32 %v1388, 0.125
    %v1395 = vmul.f32 %v1065, %v1389
    %v1396 = vmul.f32 %v1067, %v1390
    %v1397 = vmul.f32 %v1069, %v1391
    %v1398 = vmul.f32 %v1071, %v1392
    %v1399 = vmul.f32 %v1073, %v1393
    %v1400 = vmul.f32 %v1075, %v1394
    %v1401 = vsel %vm1076, %v1395, 0.0
    %1402 = vadd.xlane.f32.xlu0 %v1401
    %v1403 = vpop.xlane.xlu0 %1402
    %v1404 = vsel %vm1076, %v1396, 0.0
    %1405 = vadd.xlane.f32.xlu0 %v1404
    %v1406 = vpop.xlane.xlu0 %1405
    %v1407 = vsel %vm1076, %v1397, 0.0
    %1408 = vadd.xlane.f32.xlu0 %v1407
    %v1409 = vpop.xlane.xlu0 %1408
    %v1410 = vsel %vm1076, %v1398, 0.0
    %1411 = vadd.xlane.f32.xlu0 %v1410
    %v1412 = vpop.xlane.xlu0 %1411
    %v1413 = vsel %vm1076, %v1399, 0.0
    %1414 = vadd.xlane.f32.xlu0 %v1413
    %v1415 = vpop.xlane.xlu0 %1414
    %v1416 = vsel %vm1076, %v1400, 0.0
    %1417 = vadd.xlane.f32.xlu0 %v1416
    %v1418 = vpop.xlane.xlu0 %1417
    %v1419 = vadd.f32 %v1403, 1e-30
    %v1420 = vadd.f32 %v1406, 1e-30
    %v1421 = vadd.f32 %v1409, 1e-30
    %v1422 = vadd.f32 %v1412, 1e-30
    %v1423 = vadd.f32 %v1415, 1e-30
    %v1424 = vadd.f32 %v1418, 1e-30
    %v1425 = vrcp.pop %v1419
    %v1426 = vrcp.pop %v1420
    %v1427 = vrcp.pop %v1421
    %v1428 = vrcp.pop %v1422
    %v1429 = vrcp.pop %v1423
    %v1430 = vrcp.pop %v1424
    %v1431 = vmul.f32 %v1425, 0.125
    %v1432 = vmul.f32 %v1426, 0.125
    %v1433 = vmul.f32 %v1427, 0.125
    %v1434 = vmul.f32 %v1428, 0.125
    %v1435 = vmul.f32 %v1429, 0.125
    %v1436 = vmul.f32 %v1430, 0.125
    %v1437 = vmul.f32 %v1065, %v1431
    %v1438 = vmul.f32 %v1067, %v1432
    %v1439 = vmul.f32 %v1069, %v1433
    %v1440 = vmul.f32 %v1071, %v1434
    %v1441 = vmul.f32 %v1073, %v1435
    %v1442 = vmul.f32 %v1075, %v1436
    %v1443 = vsel %vm1076, %v1437, 0.0
    %v1444 = vrot.slane %v1443, 4
    %v1445 = vadd.f32 %v1443, %v1444
    %v1446 = vrot.slane %v1445, 2
    %v1447 = vadd.f32 %v1445, %v1446
    %v1448 = vrot.slane %v1447, 1
    %v1449 = vadd.f32 %v1447, %v1448
    %v1450 = vsel %vm1076, %v1438, 0.0
    %v1451 = vrot.slane %v1450, 4
    %v1452 = vadd.f32 %v1450, %v1451
    %v1453 = vrot.slane %v1452, 2
    %v1454 = vadd.f32 %v1452, %v1453
    %v1455 = vrot.slane %v1454, 1
    %v1456 = vadd.f32 %v1454, %v1455
    %v1457 = vsel %vm1076, %v1439, 0.0
    %v1458 = vrot.slane %v1457, 4
    %v1459 = vadd.f32 %v1457, %v1458
    %v1460 = vrot.slane %v1459, 2
    %v1461 = vadd.f32 %v1459, %v1460
    %v1462 = vrot.slane %v1461, 1
    %v1463 = vadd.f32 %v1461, %v1462
    %v1464 = vsel %vm1076, %v1440, 0.0
    %v1465 = vrot.slane %v1464, 4
    %v1466 = vadd.f32 %v1464, %v1465
    %v1467 = vrot.slane %v1466, 2
    %v1468 = vadd.f32 %v1466, %v1467
    %v1469 = vrot.slane %v1468, 1
    %v1470 = vadd.f32 %v1468, %v1469
    %v1471 = vsel %vm1076, %v1441, 0.0
    %v1472 = vrot.slane %v1471, 4
    %v1473 = vadd.f32 %v1471, %v1472
    %v1474 = vrot.slane %v1473, 2
    %v1475 = vadd.f32 %v1473, %v1474
    %v1476 = vrot.slane %v1475, 1
    %v1477 = vadd.f32 %v1475, %v1476
    %v1478 = vsel %vm1076, %v1442, 0.0
    %v1479 = vrot.slane %v1478, 4
    %v1480 = vadd.f32 %v1478, %v1479
    %v1481 = vrot.slane %v1480, 2
    %v1482 = vadd.f32 %v1480, %v1481
    %v1483 = vrot.slane %v1482, 1
    %v1484 = vadd.f32 %v1482, %v1483
    %v1485 = vadd.f32 %v1449, 1e-30
    %v1486 = vadd.f32 %v1456, 1e-30
    %v1487 = vadd.f32 %v1463, 1e-30
    %v1488 = vadd.f32 %v1470, 1e-30
    %v1489 = vadd.f32 %v1477, 1e-30
    %v1490 = vadd.f32 %v1484, 1e-30
    %v1491 = vrcp.pop %v1485
    %v1492 = vrcp.pop %v1486
    %v1493 = vrcp.pop %v1487
    %v1494 = vrcp.pop %v1488
    %v1495 = vrcp.pop %v1489
    %v1496 = vrcp.pop %v1490
    %v1497 = vmul.f32 %v1491, 0.125
    %v1498 = vmul.f32 %v1492, 0.125
    %v1499 = vmul.f32 %v1493, 0.125
    %v1500 = vmul.f32 %v1494, 0.125
    %v1501 = vmul.f32 %v1495, 0.125
    %v1502 = vmul.f32 %v1496, 0.125
    %v1503 = vmul.f32 %v1065, %v1497
    %v1504 = vmul.f32 %v1067, %v1498
    %v1505 = vmul.f32 %v1069, %v1499
    %v1506 = vmul.f32 %v1071, %v1500
    %v1507 = vmul.f32 %v1073, %v1501
    %v1508 = vmul.f32 %v1075, %v1502
    %v1509 = vsel %vm1076, %v1503, 0.0
    %1510 = vadd.xlane.f32.xlu0 %v1509
    %v1511 = vpop.xlane.xlu0 %1510
    %v1512 = vsel %vm1076, %v1504, 0.0
    %1513 = vadd.xlane.f32.xlu0 %v1512
    %v1514 = vpop.xlane.xlu0 %1513
    %v1515 = vsel %vm1076, %v1505, 0.0
    %1516 = vadd.xlane.f32.xlu0 %v1515
    %v1517 = vpop.xlane.xlu0 %1516
    %v1518 = vsel %vm1076, %v1506, 0.0
    %1519 = vadd.xlane.f32.xlu0 %v1518
    %v1520 = vpop.xlane.xlu0 %1519
    %v1521 = vsel %vm1076, %v1507, 0.0
    %1522 = vadd.xlane.f32.xlu0 %v1521
    %v1523 = vpop.xlane.xlu0 %1522
    %v1524 = vsel %vm1076, %v1508, 0.0
    %1525 = vadd.xlane.f32.xlu0 %v1524
    %v1526 = vpop.xlane.xlu0 %1525
    %v1527 = vadd.f32 %v1511, 1e-30
    %v1528 = vadd.f32 %v1514, 1e-30
    %v1529 = vadd.f32 %v1517, 1e-30
    %v1530 = vadd.f32 %v1520, 1e-30
    %v1531 = vadd.f32 %v1523, 1e-30
    %v1532 = vadd.f32 %v1526, 1e-30
    %v1533 = vrcp.pop %v1527
    %v1534 = vrcp.pop %v1528
    %v1535 = vrcp.pop %v1529
    %v1536 = vrcp.pop %v1530
    %v1537 = vrcp.pop %v1531
    %v1538 = vrcp.pop %v1532
    %v1539 = vmul.f32 %v1533, 0.125
    %v1540 = vmul.f32 %v1534, 0.125
    %v1541 = vmul.f32 %v1535, 0.125
    %v1542 = vmul.f32 %v1536, 0.125
    %v1543 = vmul.f32 %v1537, 0.125
    %v1544 = vmul.f32 %v1538, 0.125
    %v1545 = vmul.f32 %v1065, %v1539
    %v1546 = vmul.f32 %v1067, %v1540
    %v1547 = vmul.f32 %v1069, %v1541
    %v1548 = vmul.f32 %v1071, %v1542
    %v1549 = vmul.f32 %v1073, %v1543
    %v1550 = vmul.f32 %v1075, %v1544
    %v1551 = vsel %vm1076, %v1545, 0.0
    %v1552 = vrot.slane %v1551, 4
    %v1553 = vadd.f32 %v1551, %v1552
    %v1554 = vrot.slane %v1553, 2
    %v1555 = vadd.f32 %v1553, %v1554
    %v1556 = vrot.slane %v1555, 1
    %v1557 = vadd.f32 %v1555, %v1556
    %v1558 = vsel %vm1076, %v1546, 0.0
    %v1559 = vrot.slane %v1558, 4
    %v1560 = vadd.f32 %v1558, %v1559
    %v1561 = vrot.slane %v1560, 2
    %v1562 = vadd.f32 %v1560, %v1561
    %v1563 = vrot.slane %v1562, 1
    %v1564 = vadd.f32 %v1562, %v1563
    %v1565 = vsel %vm1076, %v1547, 0.0
    %v1566 = vrot.slane %v1565, 4
    %v1567 = vadd.f32 %v1565, %v1566
    %v1568 = vrot.slane %v1567, 2
    %v1569 = vadd.f32 %v1567, %v1568
    %v1570 = vrot.slane %v1569, 1
    %v1571 = vadd.f32 %v1569, %v1570
    %v1572 = vsel %vm1076, %v1548, 0.0
    %v1573 = vrot.slane %v1572, 4
    %v1574 = vadd.f32 %v1572, %v1573
    %v1575 = vrot.slane %v1574, 2
    %v1576 = vadd.f32 %v1574, %v1575
    %v1577 = vrot.slane %v1576, 1
    %v1578 = vadd.f32 %v1576, %v1577
    %v1579 = vsel %vm1076, %v1549, 0.0
    %v1580 = vrot.slane %v1579, 4
    %v1581 = vadd.f32 %v1579, %v1580
    %v1582 = vrot.slane %v1581, 2
    %v1583 = vadd.f32 %v1581, %v1582
    %v1584 = vrot.slane %v1583, 1
    %v1585 = vadd.f32 %v1583, %v1584
    %v1586 = vsel %vm1076, %v1550, 0.0
    %v1587 = vrot.slane %v1586, 4
    %v1588 = vadd.f32 %v1586, %v1587
    %v1589 = vrot.slane %v1588, 2
    %v1590 = vadd.f32 %v1588, %v1589
    %v1591 = vrot.slane %v1590, 1
    %v1592 = vadd.f32 %v1590, %v1591
    %v1593 = vadd.f32 %v1557, 1e-30
    %v1594 = vadd.f32 %v1564, 1e-30
    %v1595 = vadd.f32 %v1571, 1e-30
    %v1596 = vadd.f32 %v1578, 1e-30
    %v1597 = vadd.f32 %v1585, 1e-30
    %v1598 = vadd.f32 %v1592, 1e-30
    %v1599 = vrcp.pop %v1593
    %v1600 = vrcp.pop %v1594
    %v1601 = vrcp.pop %v1595
    %v1602 = vrcp.pop %v1596
    %v1603 = vrcp.pop %v1597
    %v1604 = vrcp.pop %v1598
    %v1605 = vmul.f32 %v1599, 0.125
    %v1606 = vmul.f32 %v1600, 0.125
    %v1607 = vmul.f32 %v1601, 0.125
    %v1608 = vmul.f32 %v1602, 0.125
    %v1609 = vmul.f32 %v1603, 0.125
    %v1610 = vmul.f32 %v1604, 0.125
    %v1611 = vmul.f32 %v1065, %v1605
    %v1612 = vmul.f32 %v1067, %v1606
    %v1613 = vmul.f32 %v1069, %v1607
    %v1614 = vmul.f32 %v1071, %v1608
    %v1615 = vmul.f32 %v1073, %v1609
    %v1616 = vmul.f32 %v1075, %v1610
    %v1617 = vsel %vm1076, %v1611, 0.0
    %1618 = vadd.xlane.f32.xlu0 %v1617
    %v1619 = vpop.xlane.xlu0 %1618
    %v1620 = vsel %vm1076, %v1612, 0.0
    %1621 = vadd.xlane.f32.xlu0 %v1620
    %v1622 = vpop.xlane.xlu0 %1621
    %v1623 = vsel %vm1076, %v1613, 0.0
    %1624 = vadd.xlane.f32.xlu0 %v1623
    %v1625 = vpop.xlane.xlu0 %1624
    %v1626 = vsel %vm1076, %v1614, 0.0
    %1627 = vadd.xlane.f32.xlu0 %v1626
    %v1628 = vpop.xlane.xlu0 %1627
    %v1629 = vsel %vm1076, %v1615, 0.0
    %1630 = vadd.xlane.f32.xlu0 %v1629
    %v1631 = vpop.xlane.xlu0 %1630
    %v1632 = vsel %vm1076, %v1616, 0.0
    %1633 = vadd.xlane.f32.xlu0 %v1632
    %v1634 = vpop.xlane.xlu0 %1633
    %v1635 = vadd.f32 %v1619, 1e-30
    %v1636 = vadd.f32 %v1622, 1e-30
    %v1637 = vadd.f32 %v1625, 1e-30
    %v1638 = vadd.f32 %v1628, 1e-30
    %v1639 = vadd.f32 %v1631, 1e-30
    %v1640 = vadd.f32 %v1634, 1e-30
    %v1641 = vrcp.pop %v1635
    %v1642 = vrcp.pop %v1636
    %v1643 = vrcp.pop %v1637
    %v1644 = vrcp.pop %v1638
    %v1645 = vrcp.pop %v1639
    %v1646 = vrcp.pop %v1640
    %v1647 = vmul.f32 %v1641, 0.125
    %v1648 = vmul.f32 %v1642, 0.125
    %v1649 = vmul.f32 %v1643, 0.125
    %v1650 = vmul.f32 %v1644, 0.125
    %v1651 = vmul.f32 %v1645, 0.125
    %v1652 = vmul.f32 %v1646, 0.125
    %v1653 = vmul.f32 %v1065, %v1647
    %v1654 = vmul.f32 %v1067, %v1648
    %v1655 = vmul.f32 %v1069, %v1649
    %v1656 = vmul.f32 %v1071, %v1650
    %v1657 = vmul.f32 %v1073, %v1651
    %v1658 = vmul.f32 %v1075, %v1652
    %v1659 = vsel %vm1076, %v1653, 0.0
    %v1660 = vrot.slane %v1659, 4
    %v1661 = vadd.f32 %v1659, %v1660
    %v1662 = vrot.slane %v1661, 2
    %v1663 = vadd.f32 %v1661, %v1662
    %v1664 = vrot.slane %v1663, 1
    %v1665 = vadd.f32 %v1663, %v1664
    %v1666 = vsel %vm1076, %v1654, 0.0
    %v1667 = vrot.slane %v1666, 4
    %v1668 = vadd.f32 %v1666, %v1667
    %v1669 = vrot.slane %v1668, 2
    %v1670 = vadd.f32 %v1668, %v1669
    %v1671 = vrot.slane %v1670, 1
    %v1672 = vadd.f32 %v1670, %v1671
    %v1673 = vsel %vm1076, %v1655, 0.0
    %v1674 = vrot.slane %v1673, 4
    %v1675 = vadd.f32 %v1673, %v1674
    %v1676 = vrot.slane %v1675, 2
    %v1677 = vadd.f32 %v1675, %v1676
    %v1678 = vrot.slane %v1677, 1
    %v1679 = vadd.f32 %v1677, %v1678
    %v1680 = vsel %vm1076, %v1656, 0.0
    %v1681 = vrot.slane %v1680, 4
    %v1682 = vadd.f32 %v1680, %v1681
    %v1683 = vrot.slane %v1682, 2
    %v1684 = vadd.f32 %v1682, %v1683
    %v1685 = vrot.slane %v1684, 1
    %v1686 = vadd.f32 %v1684, %v1685
    %v1687 = vsel %vm1076, %v1657, 0.0
    %v1688 = vrot.slane %v1687, 4
    %v1689 = vadd.f32 %v1687, %v1688
    %v1690 = vrot.slane %v1689, 2
    %v1691 = vadd.f32 %v1689, %v1690
    %v1692 = vrot.slane %v1691, 1
    %v1693 = vadd.f32 %v1691, %v1692
    %v1694 = vsel %vm1076, %v1658, 0.0
    %v1695 = vrot.slane %v1694, 4
    %v1696 = vadd.f32 %v1694, %v1695
    %v1697 = vrot.slane %v1696, 2
    %v1698 = vadd.f32 %v1696, %v1697
    %v1699 = vrot.slane %v1698, 1
    %v1700 = vadd.f32 %v1698, %v1699
    %v1701 = vadd.f32 %v1665, 1e-30
    %v1702 = vadd.f32 %v1672, 1e-30
    %v1703 = vadd.f32 %v1679, 1e-30
    %v1704 = vadd.f32 %v1686, 1e-30
    %v1705 = vadd.f32 %v1693, 1e-30
    %v1706 = vadd.f32 %v1700, 1e-30
    %v1707 = vrcp.pop %v1701
    %v1708 = vrcp.pop %v1702
    %v1709 = vrcp.pop %v1703
    %v1710 = vrcp.pop %v1704
    %v1711 = vrcp.pop %v1705
    %v1712 = vrcp.pop %v1706
    %v1713 = vmul.f32 %v1707, 0.125
    %v1714 = vmul.f32 %v1708, 0.125
    %v1715 = vmul.f32 %v1709, 0.125
    %v1716 = vmul.f32 %v1710, 0.125
    %v1717 = vmul.f32 %v1711, 0.125
    %v1718 = vmul.f32 %v1712, 0.125
    %v1719 = vmul.f32 %v1065, %v1713
    %v1720 = vmul.f32 %v1067, %v1714
    %v1721 = vmul.f32 %v1069, %v1715
    %v1722 = vmul.f32 %v1071, %v1716
    %v1723 = vmul.f32 %v1073, %v1717
    %v1724 = vmul.f32 %v1075, %v1718
    %v1725 = vsel %vm1076, %v1719, 0.0
    %1726 = vadd.xlane.f32.xlu0 %v1725
    %v1727 = vpop.xlane.xlu0 %1726
    %v1728 = vsel %vm1076, %v1720, 0.0
    %1729 = vadd.xlane.f32.xlu0 %v1728
    %v1730 = vpop.xlane.xlu0 %1729
    %v1731 = vsel %vm1076, %v1721, 0.0
    %1732 = vadd.xlane.f32.xlu0 %v1731
    %v1733 = vpop.xlane.xlu0 %1732
    %v1734 = vsel %vm1076, %v1722, 0.0
    %1735 = vadd.xlane.f32.xlu0 %v1734
    %v1736 = vpop.xlane.xlu0 %1735
    %v1737 = vsel %vm1076, %v1723, 0.0
    %1738 = vadd.xlane.f32.xlu0 %v1737
    %v1739 = vpop.xlane.xlu0 %1738
    %v1740 = vsel %vm1076, %v1724, 0.0
    %1741 = vadd.xlane.f32.xlu0 %v1740
    %v1742 = vpop.xlane.xlu0 %1741
    %v1743 = vadd.f32 %v1727, 1e-30
    %v1744 = vadd.f32 %v1730, 1e-30
    %v1745 = vadd.f32 %v1733, 1e-30
    %v1746 = vadd.f32 %v1736, 1e-30
    %v1747 = vadd.f32 %v1739, 1e-30
    %v1748 = vadd.f32 %v1742, 1e-30
    %v1749 = vrcp.pop %v1743
    %v1750 = vrcp.pop %v1744
    %v1751 = vrcp.pop %v1745
    %v1752 = vrcp.pop %v1746
    %v1753 = vrcp.pop %v1747
    %v1754 = vrcp.pop %v1748
    %v1755 = vmul.f32 %v1749, 0.125
    %v1756 = vmul.f32 %v1750, 0.125
    %v1757 = vmul.f32 %v1751, 0.125
    %v1758 = vmul.f32 %v1752, 0.125
    %v1759 = vmul.f32 %v1753, 0.125
    %v1760 = vmul.f32 %v1754, 0.125
    %v1761 = vmul.f32 %v1065, %v1755
    %v1762 = vmul.f32 %v1067, %v1756
    %v1763 = vmul.f32 %v1069, %v1757
    %v1764 = vmul.f32 %v1071, %v1758
    %v1765 = vmul.f32 %v1073, %v1759
    %v1766 = vmul.f32 %v1075, %v1760
    %v1767 = vsel %vm1076, %v1761, 0.0
    %v1768 = vrot.slane %v1767, 4
    %v1769 = vadd.f32 %v1767, %v1768
    %v1770 = vrot.slane %v1769, 2
    %v1771 = vadd.f32 %v1769, %v1770
    %v1772 = vrot.slane %v1771, 1
    %v1773 = vadd.f32 %v1771, %v1772
    %v1774 = vsel %vm1076, %v1762, 0.0
    %v1775 = vrot.slane %v1774, 4
    %v1776 = vadd.f32 %v1774, %v1775
    %v1777 = vrot.slane %v1776, 2
    %v1778 = vadd.f32 %v1776, %v1777
    %v1779 = vrot.slane %v1778, 1
    %v1780 = vadd.f32 %v1778, %v1779
    %v1781 = vsel %vm1076, %v1763, 0.0
    %v1782 = vrot.slane %v1781, 4
    %v1783 = vadd.f32 %v1781, %v1782
    %v1784 = vrot.slane %v1783, 2
    %v1785 = vadd.f32 %v1783, %v1784
    %v1786 = vrot.slane %v1785, 1
    %v1787 = vadd.f32 %v1785, %v1786
    %v1788 = vsel %vm1076, %v1764, 0.0
    %v1789 = vrot.slane %v1788, 4
    %v1790 = vadd.f32 %v1788, %v1789
    %v1791 = vrot.slane %v1790, 2
    %v1792 = vadd.f32 %v1790, %v1791
    %v1793 = vrot.slane %v1792, 1
    %v1794 = vadd.f32 %v1792, %v1793
    %v1795 = vsel %vm1076, %v1765, 0.0
    %v1796 = vrot.slane %v1795, 4
    %v1797 = vadd.f32 %v1795, %v1796
    %v1798 = vrot.slane %v1797, 2
    %v1799 = vadd.f32 %v1797, %v1798
    %v1800 = vrot.slane %v1799, 1
    %v1801 = vadd.f32 %v1799, %v1800
    %v1802 = vsel %vm1076, %v1766, 0.0
    %v1803 = vrot.slane %v1802, 4
    %v1804 = vadd.f32 %v1802, %v1803
    %v1805 = vrot.slane %v1804, 2
    %v1806 = vadd.f32 %v1804, %v1805
    %v1807 = vrot.slane %v1806, 1
    %v1808 = vadd.f32 %v1806, %v1807
    %v1809 = vadd.f32 %v1773, 1e-30
    %v1810 = vadd.f32 %v1780, 1e-30
    %v1811 = vadd.f32 %v1787, 1e-30
    %v1812 = vadd.f32 %v1794, 1e-30
    %v1813 = vadd.f32 %v1801, 1e-30
    %v1814 = vadd.f32 %v1808, 1e-30
    %v1815 = vrcp.pop %v1809
    %v1816 = vrcp.pop %v1810
    %v1817 = vrcp.pop %v1811
    %v1818 = vrcp.pop %v1812
    %v1819 = vrcp.pop %v1813
    %v1820 = vrcp.pop %v1814
    %v1821 = vmul.f32 %v1815, 0.125
    %v1822 = vmul.f32 %v1816, 0.125
    %v1823 = vmul.f32 %v1817, 0.125
    %v1824 = vmul.f32 %v1818, 0.125
    %v1825 = vmul.f32 %v1819, 0.125
    %v1826 = vmul.f32 %v1820, 0.125
    %v1827 = vmul.f32 %v1065, %v1821
    %v1828 = vmul.f32 %v1067, %v1822
    %v1829 = vmul.f32 %v1069, %v1823
    %v1830 = vmul.f32 %v1071, %v1824
    %v1831 = vmul.f32 %v1073, %v1825
    %v1832 = vmul.f32 %v1075, %v1826
    %v1833 = vsel %vm1076, %v1827, 0.0
    %1834 = vadd.xlane.f32.xlu0 %v1833
    %v1835 = vpop.xlane.xlu0 %1834
    %v1836 = vsel %vm1076, %v1828, 0.0
    %1837 = vadd.xlane.f32.xlu0 %v1836
    %v1838 = vpop.xlane.xlu0 %1837
    %v1839 = vsel %vm1076, %v1829, 0.0
    %1840 = vadd.xlane.f32.xlu0 %v1839
    %v1841 = vpop.xlane.xlu0 %1840
    %v1842 = vsel %vm1076, %v1830, 0.0
    %1843 = vadd.xlane.f32.xlu0 %v1842
    %v1844 = vpop.xlane.xlu0 %1843
    %v1845 = vsel %vm1076, %v1831, 0.0
    %1846 = vadd.xlane.f32.xlu0 %v1845
    %v1847 = vpop.xlane.xlu0 %1846
    %v1848 = vsel %vm1076, %v1832, 0.0
    %1849 = vadd.xlane.f32.xlu0 %v1848
    %v1850 = vpop.xlane.xlu0 %1849
    %v1851 = vadd.f32 %v1835, 1e-30
    %v1852 = vadd.f32 %v1838, 1e-30
    %v1853 = vadd.f32 %v1841, 1e-30
    %v1854 = vadd.f32 %v1844, 1e-30
    %v1855 = vadd.f32 %v1847, 1e-30
    %v1856 = vadd.f32 %v1850, 1e-30
    %v1857 = vrcp.pop %v1851
    %v1858 = vrcp.pop %v1852
    %v1859 = vrcp.pop %v1853
    %v1860 = vrcp.pop %v1854
    %v1861 = vrcp.pop %v1855
    %v1862 = vrcp.pop %v1856
    %v1863 = vmul.f32 %v1857, 0.125
    %v1864 = vmul.f32 %v1858, 0.125
    %v1865 = vmul.f32 %v1859, 0.125
    %v1866 = vmul.f32 %v1860, 0.125
    %v1867 = vmul.f32 %v1861, 0.125
    %v1868 = vmul.f32 %v1862, 0.125
    %v1869 = vmul.f32 %v1065, %v1863
    %v1870 = vmul.f32 %v1067, %v1864
    %v1871 = vmul.f32 %v1069, %v1865
    %v1872 = vmul.f32 %v1071, %v1866
    %v1873 = vmul.f32 %v1073, %v1867
    %v1874 = vmul.f32 %v1075, %v1868
    %v1875 = vsel %vm1076, %v1869, 0.0
    %v1876 = vrot.slane %v1875, 4
    %v1877 = vadd.f32 %v1875, %v1876
    %v1878 = vrot.slane %v1877, 2
    %v1879 = vadd.f32 %v1877, %v1878
    %v1880 = vrot.slane %v1879, 1
    %v1881 = vadd.f32 %v1879, %v1880
    %v1882 = vsel %vm1076, %v1870, 0.0
    %v1883 = vrot.slane %v1882, 4
    %v1884 = vadd.f32 %v1882, %v1883
    %v1885 = vrot.slane %v1884, 2
    %v1886 = vadd.f32 %v1884, %v1885
    %v1887 = vrot.slane %v1886, 1
    %v1888 = vadd.f32 %v1886, %v1887
    %v1889 = vsel %vm1076, %v1871, 0.0
    %v1890 = vrot.slane %v1889, 4
    %v1891 = vadd.f32 %v1889, %v1890
    %v1892 = vrot.slane %v1891, 2
    %v1893 = vadd.f32 %v1891, %v1892
    %v1894 = vrot.slane %v1893, 1
    %v1895 = vadd.f32 %v1893, %v1894
    %v1896 = vsel %vm1076, %v1872, 0.0
    %v1897 = vrot.slane %v1896, 4
    %v1898 = vadd.f32 %v1896, %v1897
    %v1899 = vrot.slane %v1898, 2
    %v1900 = vadd.f32 %v1898, %v1899
    %v1901 = vrot.slane %v1900, 1
    %v1902 = vadd.f32 %v1900, %v1901
    %v1903 = vsel %vm1076, %v1873, 0.0
    %v1904 = vrot.slane %v1903, 4
    %v1905 = vadd.f32 %v1903, %v1904
    %v1906 = vrot.slane %v1905, 2
    %v1907 = vadd.f32 %v1905, %v1906
    %v1908 = vrot.slane %v1907, 1
    %v1909 = vadd.f32 %v1907, %v1908
    %v1910 = vsel %vm1076, %v1874, 0.0
    %v1911 = vrot.slane %v1910, 4
    %v1912 = vadd.f32 %v1910, %v1911
    %v1913 = vrot.slane %v1912, 2
    %v1914 = vadd.f32 %v1912, %v1913
    %v1915 = vrot.slane %v1914, 1
    %v1916 = vadd.f32 %v1914, %v1915
    %v1917 = vadd.f32 %v1881, 1e-30
    %v1918 = vadd.f32 %v1888, 1e-30
    %v1919 = vadd.f32 %v1895, 1e-30
    %v1920 = vadd.f32 %v1902, 1e-30
    %v1921 = vadd.f32 %v1909, 1e-30
    %v1922 = vadd.f32 %v1916, 1e-30
    %v1923 = vrcp.pop %v1917
    %v1924 = vrcp.pop %v1918
    %v1925 = vrcp.pop %v1919
    %v1926 = vrcp.pop %v1920
    %v1927 = vrcp.pop %v1921
    %v1928 = vrcp.pop %v1922
    %v1929 = vmul.f32 %v1923, 0.125
    %v1930 = vmul.f32 %v1924, 0.125
    %v1931 = vmul.f32 %v1925, 0.125
    %v1932 = vmul.f32 %v1926, 0.125
    %v1933 = vmul.f32 %v1927, 0.125
    %v1934 = vmul.f32 %v1928, 0.125
    %v1935 = vmul.f32 %v1065, %v1929
    %v1936 = vmul.f32 %v1067, %v1930
    %v1937 = vmul.f32 %v1069, %v1931
    %v1938 = vmul.f32 %v1071, %v1932
    %v1939 = vmul.f32 %v1073, %v1933
    %v1940 = vmul.f32 %v1075, %v1934
    %v1941 = vsel %vm1076, %v1935, 0.0
    %1942 = vadd.xlane.f32.xlu0 %v1941
    %v1943 = vpop.xlane.xlu0 %1942
    %v1944 = vsel %vm1076, %v1936, 0.0
    %1945 = vadd.xlane.f32.xlu0 %v1944
    %v1946 = vpop.xlane.xlu0 %1945
    %v1947 = vsel %vm1076, %v1937, 0.0
    %1948 = vadd.xlane.f32.xlu0 %v1947
    %v1949 = vpop.xlane.xlu0 %1948
    %v1950 = vsel %vm1076, %v1938, 0.0
    %1951 = vadd.xlane.f32.xlu0 %v1950
    %v1952 = vpop.xlane.xlu0 %1951
    %v1953 = vsel %vm1076, %v1939, 0.0
    %1954 = vadd.xlane.f32.xlu0 %v1953
    %v1955 = vpop.xlane.xlu0 %1954
    %v1956 = vsel %vm1076, %v1940, 0.0
    %1957 = vadd.xlane.f32.xlu0 %v1956
    %v1958 = vpop.xlane.xlu0 %1957
    %v1959 = vadd.f32 %v1943, 1e-30
    %v1960 = vadd.f32 %v1946, 1e-30
    %v1961 = vadd.f32 %v1949, 1e-30
    %v1962 = vadd.f32 %v1952, 1e-30
    %v1963 = vadd.f32 %v1955, 1e-30
    %v1964 = vadd.f32 %v1958, 1e-30
    %v1965 = vrcp.pop %v1959
    %v1966 = vrcp.pop %v1960
    %v1967 = vrcp.pop %v1961
    %v1968 = vrcp.pop %v1962
    %v1969 = vrcp.pop %v1963
    %v1970 = vrcp.pop %v1964
    %v1971 = vmul.f32 %v1965, 0.125
    %v1972 = vmul.f32 %v1966, 0.125
    %v1973 = vmul.f32 %v1967, 0.125
    %v1974 = vmul.f32 %v1968, 0.125
    %v1975 = vmul.f32 %v1969, 0.125
    %v1976 = vmul.f32 %v1970, 0.125
    %v1977 = vmul.f32 %v1065, %v1971
    %v1978 = vmul.f32 %v1067, %v1972
    %v1979 = vmul.f32 %v1069, %v1973
    %v1980 = vmul.f32 %v1071, %v1974
    %v1981 = vmul.f32 %v1073, %v1975
    %v1982 = vmul.f32 %v1075, %v1976
    %v1983 = vsel %vm1076, %v1977, 0.0
    %v1984 = vrot.slane %v1983, 4
    %v1985 = vadd.f32 %v1983, %v1984
    %v1986 = vrot.slane %v1985, 2
    %v1987 = vadd.f32 %v1985, %v1986
    %v1988 = vrot.slane %v1987, 1
    %v1989 = vadd.f32 %v1987, %v1988
    %v1990 = vsel %vm1076, %v1978, 0.0
    %v1991 = vrot.slane %v1990, 4
    %v1992 = vadd.f32 %v1990, %v1991
    %v1993 = vrot.slane %v1992, 2
    %v1994 = vadd.f32 %v1992, %v1993
    %v1995 = vrot.slane %v1994, 1
    %v1996 = vadd.f32 %v1994, %v1995
    %v1997 = vsel %vm1076, %v1979, 0.0
    %v1998 = vrot.slane %v1997, 4
    %v1999 = vadd.f32 %v1997, %v1998
    %v2000 = vrot.slane %v1999, 2
    %v2001 = vadd.f32 %v1999, %v2000
    %v2002 = vrot.slane %v2001, 1
    %v2003 = vadd.f32 %v2001, %v2002
    %v2004 = vsel %vm1076, %v1980, 0.0
    %v2005 = vrot.slane %v2004, 4
    %v2006 = vadd.f32 %v2004, %v2005
    %v2007 = vrot.slane %v2006, 2
    %v2008 = vadd.f32 %v2006, %v2007
    %v2009 = vrot.slane %v2008, 1
    %v2010 = vadd.f32 %v2008, %v2009
    %v2011 = vsel %vm1076, %v1981, 0.0
    %v2012 = vrot.slane %v2011, 4
    %v2013 = vadd.f32 %v2011, %v2012
    %v2014 = vrot.slane %v2013, 2
    %v2015 = vadd.f32 %v2013, %v2014
    %v2016 = vrot.slane %v2015, 1
    %v2017 = vadd.f32 %v2015, %v2016
    %v2018 = vsel %vm1076, %v1982, 0.0
    %v2019 = vrot.slane %v2018, 4
    %v2020 = vadd.f32 %v2018, %v2019
    %v2021 = vrot.slane %v2020, 2
    %v2022 = vadd.f32 %v2020, %v2021
    %v2023 = vrot.slane %v2022, 1
    %v2024 = vadd.f32 %v2022, %v2023
    %v2025 = vadd.f32 %v1989, 1e-30
    %v2026 = vadd.f32 %v1996, 1e-30
    %v2027 = vadd.f32 %v2003, 1e-30
    %v2028 = vadd.f32 %v2010, 1e-30
    %v2029 = vadd.f32 %v2017, 1e-30
    %v2030 = vadd.f32 %v2024, 1e-30
    %v2031 = vrcp.pop %v2025
    %v2032 = vrcp.pop %v2026
    %v2033 = vrcp.pop %v2027
    %v2034 = vrcp.pop %v2028
    %v2035 = vrcp.pop %v2029
    %v2036 = vrcp.pop %v2030
    %v2037 = vmul.f32 %v2031, 0.125
    %v2038 = vmul.f32 %v2032, 0.125
    %v2039 = vmul.f32 %v2033, 0.125
    %v2040 = vmul.f32 %v2034, 0.125
    %v2041 = vmul.f32 %v2035, 0.125
    %v2042 = vmul.f32 %v2036, 0.125
    %v2043 = vmul.f32 %v1065, %v2037
    %v2044 = vmul.f32 %v1067, %v2038
    %v2045 = vmul.f32 %v1069, %v2039
    %v2046 = vmul.f32 %v1071, %v2040
    %v2047 = vmul.f32 %v1073, %v2041
    %v2048 = vmul.f32 %v1075, %v2042
    %v2049 = vsel %vm1076, %v2043, 0.0
    %2050 = vadd.xlane.f32.xlu0 %v2049
    %v2051 = vpop.xlane.xlu0 %2050
    %v2052 = vsel %vm1076, %v2044, 0.0
    %2053 = vadd.xlane.f32.xlu0 %v2052
    %v2054 = vpop.xlane.xlu0 %2053
    %v2055 = vsel %vm1076, %v2045, 0.0
    %2056 = vadd.xlane.f32.xlu0 %v2055
    %v2057 = vpop.xlane.xlu0 %2056
    %v2058 = vsel %vm1076, %v2046, 0.0
    %2059 = vadd.xlane.f32.xlu0 %v2058
    %v2060 = vpop.xlane.xlu0 %2059
    %v2061 = vsel %vm1076, %v2047, 0.0
    %2062 = vadd.xlane.f32.xlu0 %v2061
    %v2063 = vpop.xlane.xlu0 %2062
    %v2064 = vsel %vm1076, %v2048, 0.0
    %2065 = vadd.xlane.f32.xlu0 %v2064
    %v2066 = vpop.xlane.xlu0 %2065
    %v2067 = vadd.f32 %v2051, 1e-30
    %v2068 = vadd.f32 %v2054, 1e-30
    %v2069 = vadd.f32 %v2057, 1e-30
    %v2070 = vadd.f32 %v2060, 1e-30
    %v2071 = vadd.f32 %v2063, 1e-30
    %v2072 = vadd.f32 %v2066, 1e-30
    %v2073 = vrcp.pop %v2067
    %v2074 = vrcp.pop %v2068
    %v2075 = vrcp.pop %v2069
    %v2076 = vrcp.pop %v2070
    %v2077 = vrcp.pop %v2071
    %v2078 = vrcp.pop %v2072
    %v2079 = vmul.f32 %v2073, 0.125
    %v2080 = vmul.f32 %v2074, 0.125
    %v2081 = vmul.f32 %v2075, 0.125
    %v2082 = vmul.f32 %v2076, 0.125
    %v2083 = vmul.f32 %v2077, 0.125
    %v2084 = vmul.f32 %v2078, 0.125
    %v2085 = vmul.f32 %v1065, %v2079
    %v2086 = vmul.f32 %v1067, %v2080
    %v2087 = vmul.f32 %v1069, %v2081
    %v2088 = vmul.f32 %v1071, %v2082
    %v2089 = vmul.f32 %v1073, %v2083
    %v2090 = vmul.f32 %v1075, %v2084
    %v2091 = vsel %vm1076, %v2085, 0.0
    %v2092 = vrot.slane %v2091, 4
    %v2093 = vadd.f32 %v2091, %v2092
    %v2094 = vrot.slane %v2093, 2
    %v2095 = vadd.f32 %v2093, %v2094
    %v2096 = vrot.slane %v2095, 1
    %v2097 = vadd.f32 %v2095, %v2096
    %v2098 = vsel %vm1076, %v2086, 0.0
    %v2099 = vrot.slane %v2098, 4
    %v2100 = vadd.f32 %v2098, %v2099
    %v2101 = vrot.slane %v2100, 2
    %v2102 = vadd.f32 %v2100, %v2101
    %v2103 = vrot.slane %v2102, 1
    %v2104 = vadd.f32 %v2102, %v2103
    %v2105 = vsel %vm1076, %v2087, 0.0
    %v2106 = vrot.slane %v2105, 4
    %v2107 = vadd.f32 %v2105, %v2106
    %v2108 = vrot.slane %v2107, 2
    %v2109 = vadd.f32 %v2107, %v2108
    %v2110 = vrot.slane %v2109, 1
    %v2111 = vadd.f32 %v2109, %v2110
    %v2112 = vsel %vm1076, %v2088, 0.0
    %v2113 = vrot.slane %v2112, 4
    %v2114 = vadd.f32 %v2112, %v2113
    %v2115 = vrot.slane %v2114, 2
    %v2116 = vadd.f32 %v2114, %v2115
    %v2117 = vrot.slane %v2116, 1
    %v2118 = vadd.f32 %v2116, %v2117
    %v2119 = vsel %vm1076, %v2089, 0.0
    %v2120 = vrot.slane %v2119, 4
    %v2121 = vadd.f32 %v2119, %v2120
    %v2122 = vrot.slane %v2121, 2
    %v2123 = vadd.f32 %v2121, %v2122
    %v2124 = vrot.slane %v2123, 1
    %v2125 = vadd.f32 %v2123, %v2124
    %v2126 = vsel %vm1076, %v2090, 0.0
    %v2127 = vrot.slane %v2126, 4
    %v2128 = vadd.f32 %v2126, %v2127
    %v2129 = vrot.slane %v2128, 2
    %v2130 = vadd.f32 %v2128, %v2129
    %v2131 = vrot.slane %v2130, 1
    %v2132 = vadd.f32 %v2130, %v2131
    %v2133 = vadd.f32 %v2097, 1e-30
    %v2134 = vadd.f32 %v2104, 1e-30
    %v2135 = vadd.f32 %v2111, 1e-30
    %v2136 = vadd.f32 %v2118, 1e-30
    %v2137 = vadd.f32 %v2125, 1e-30
    %v2138 = vadd.f32 %v2132, 1e-30
    %v2139 = vrcp.pop %v2133
    %v2140 = vrcp.pop %v2134
    %v2141 = vrcp.pop %v2135
    %v2142 = vrcp.pop %v2136
    %v2143 = vrcp.pop %v2137
    %v2144 = vrcp.pop %v2138
    %v2145 = vmul.f32 %v2139, 0.125
    %v2146 = vmul.f32 %v2140, 0.125
    %v2147 = vmul.f32 %v2141, 0.125
    %v2148 = vmul.f32 %v2142, 0.125
    %v2149 = vmul.f32 %v2143, 0.125
    %v2150 = vmul.f32 %v2144, 0.125
    %v2151 = vmul.f32 %v2085, %v2145
    %v2152 = vmul.f32 %v2086, %v2146
    %v2153 = vmul.f32 %v2087, %v2147
    %v2154 = vmul.f32 %v2088, %v2148
    %v2155 = vmul.f32 %v2089, %v2149
    %v2156 = vmul.f32 %v2090, %v2150
    %v2157 = vmul.f32 %v2151, %v1046
    %v2158 = vmul.f32 %v2152, %v1047
    %v2159 = vmul.f32 %v2153, %v1048
    %v2160 = vmul.f32 %v2154, %v1049
    %v2161 = vmul.f32 %v2155, %v1050
    %v2162 = vmul.f32 %v2156, %v1051
    %v2163 = vadd.f32 %v2157, %v2158
    %v2164 = vadd.f32 %v2163, %v2159
    %v2165 = vadd.f32 %v2164, %v2160
    %v2166 = vadd.f32 %v2161, %v2162
    %v2167 = vmul.f32 %v2166, 2.0
    %v2168 = vsub.f32 %v2165, %v2167
    %v2169 = vsel %vm1076, %v2168, 0.0
    %2170 = vadd.xlane.f32.xlu0 %v2169
    %v2171 = vpop.xlane.xlu0 %2170
    %v2172 = vrot.slane %v2171, 4
    %v2173 = vadd.f32 %v2171, %v2172
    %v2174 = vrot.slane %v2173, 2
    %v2175 = vadd.f32 %v2173, %v2174
    %v2176 = vrot.slane %v2175, 1
    %v2177 = vadd.f32 %v2175, %v2176
    %s2178 = vtos %v2177
    %s2179 = scalar_lea.smem [#allocation2], 0
    %2180 = sst [smem:[%s2179]] %s2178
    // Predicated region
    $region22: #{minibatch_energy_distance.1} parent=1 // pred_check
      _
    $region23: #{minibatch_energy_distance.1} parent=1 // pred_check_branch
      %2182 = sbr.rel (0) target = $region25
    $region24: #{minibatch_energy_distance.1} parent=1 // pred_region
      %s2184 = ssub.s32 16, 16
      %2185 = vsyncadd [#allocation3], %s2184
      %2188 = dma.smem_to_hbm [#allocation2], 16, %s5, [#allocation3]
    $region25: #{minibatch_energy_distance.1} parent=1 // pred_fallthru
      _
    // Predicated region
    $region26: #{minibatch_energy_distance.1} parent=1 // pred_check
      _
    $region27: #{minibatch_energy_distance.1} parent=1 // pred_check_branch
      %2190 = sbr.rel (0) target = $region29
    $region28: #{minibatch_energy_distance.1} parent=1 // pred_region
      %2191 = dma.done [#allocation3], 16
    $region29: #{minibatch_energy_distance.1} parent=1 // pred_fallthru
      _
    %2192 = sfence
    %2193 = vsyncpa [#allocation3], 1

</llo_original>
